<compile_context>
chip_gen: v7x
topology: tpu7x:2x2x1
jax: 0.10.0
libtpu: 0.0.40
codegen_flags: <defaults>
</compile_context>

<pallas_src>
import functools
import jax
import jax.numpy as jnp
from jax.experimental import pallas as pl
from jax.experimental.pallas import tpu as pltpu

# ----------------- small synthetic RoBERTa config -----------------
BERT_HIDDEN = 32          # stands in for 1024 of roberta-large
NUM_LAYERS = 2
NUM_HEADS = 4
HEAD_DIM = BERT_HIDDEN // NUM_HEADS
INTERMEDIATE = 64
VOCAB = 64
MAX_POS = 64
TYPE_VOCAB = 1
PAD_TOKEN_ID = 1
NUM_LABELS = 3            # tagset_size for SciTail-style task
LN_EPS = 1e-5
LANE_PAD = 128            # lane-dense padded width for the tiny logits output

# TODO(synk): at this toy H=32 / HEAD_DIM=8 size the MXU cannot be exercised;
# the kernel structure (per-layer fusion, bf16 operands, batch-parallel grid)
# is what carries over to the real 1024-hidden configuration.  At real scale
# (H=1024, I=4096, S=512) the per-layer weights (~24 MB bf16) still fit the
# 48 MB VMEM budget, but attention would be tiled flash-style over KV blocks.


def _cparams(n_grid_axes):
    return pltpu.CompilerParams(
        dimension_semantics=("parallel",) * n_grid_axes,
        vmem_limit_bytes=48 * 1024 * 1024,   # fits v7x's 64 MiB VMEM, fine on v5e/v6e
    )


def _pick_row_tile(m):
    # largest "nice" row tile (multiple of 8) that divides M; full M otherwise
    for t in (512, 256, 128, 64, 32, 16, 8):
        if t < m and m % t == 0:
            return t
    return m


def _layernorm_f32(y, g, b):
    mean = jnp.mean(y, axis=-1, keepdims=True)
    var = jnp.mean((y - mean) ** 2, axis=-1, keepdims=True)
    return (y - mean) * jax.lax.rsqrt(var + LN_EPS) * g + b


def _gelu_tanh(a):
    # TODO(synk): tanh-approx GELU; HF RoBERTa uses erf GELU (~1e-3 drift).
    return 0.5 * a * (1.0 + jnp.tanh(0.7978845608028654 *
                                     (a + 0.044715 * a * a * a)))


# ----------------- Pallas kernels -----------------
def _layernorm_kernel(x_ref, g_ref, b_ref, o_ref):
    x = x_ref[...].astype(jnp.float32)
    o_ref[...] = _layernorm_f32(x, g_ref[...], b_ref[...]).astype(o_ref.dtype)


def _encoder_layer_kernel(x_ref, mask_ref, wqkv_ref, bqkv_ref, wo_ref, bo_ref,
                          g1_ref, beta1_ref, w1_ref, b1_ref, w2_ref, b2_ref,
                          g2_ref, beta2_ref, o_ref,
                          *, num_heads, head_dim, hidden, scale):
    # One batch element per grid step: the entire transformer layer
    # (QKV proj -> MHA -> out-proj -> +res -> LN -> FFN(gelu) -> +res -> LN)
    # runs fused in VMEM; no intermediates hit HBM.
    x = x_ref[0].astype(jnp.float32)                           # (S, H) residual
    x_bf = x.astype(jnp.bfloat16)

    # fused Q/K/V projection: (S, H) @ (H, 3H) -- bf16 MXU operands, f32 acc
    z = (jnp.dot(x_bf, wqkv_ref[...], preferred_element_type=jnp.float32)
         + bqkv_ref[...]).astype(jnp.bfloat16)                 # (S, 3H)

    # additive mask bias computed once per block from the (1, S) mask row
    bias = (1.0 - mask_ref[0].astype(jnp.float32)) * -10000.0  # (1, S)

    # per-head attention + per-head slice of the output projection, accumulated
    attn_out = bo_ref[...] + x                                 # out-proj bias + residual
    for h in range(num_heads):                                 # static unrolled head loop
        qs = h * head_dim
        qh = z[:, qs:qs + head_dim]                                    # (S, D) bf16
        kh = z[:, hidden + qs:hidden + qs + head_dim]                  # (S, D) bf16
        vh = z[:, 2 * hidden + qs:2 * hidden + qs + head_dim]          # (S, D) bf16

        s = jax.lax.dot_general(qh, kh, (((1,), (1,)), ((), ())),
                                preferred_element_type=jnp.float32) * scale
        s = s + bias
        m = jnp.max(s, axis=-1, keepdims=True)
        p = jnp.exp(s - m)
        p = p * pl.reciprocal(jnp.sum(p, axis=-1, keepdims=True), approx=True)

        ctx = jnp.dot(p.astype(jnp.bfloat16), vh,
                      preferred_element_type=jnp.float32)              # (S, D)
        attn_out = attn_out + jnp.dot(ctx.astype(jnp.bfloat16), wo_ref[h],
                                      preferred_element_type=jnp.float32)  # (S, H)

    h1 = _layernorm_f32(attn_out, g1_ref[...], beta1_ref[...])          # (S, H) f32

    # fused FFN: gelu(h1 @ W1 + b1) @ W2 + b2 + residual -> layernorm
    a = jnp.dot(h1.astype(jnp.bfloat16), w1_ref[...],
                preferred_element_type=jnp.float32) + b1_ref[...]
    a = _gelu_tanh(a)
    y = jnp.dot(a.astype(jnp.bfloat16), w2_ref[...],
                preferred_element_type=jnp.float32) + b2_ref[...] + h1
    o_ref[0] = _layernorm_f32(y, g2_ref[...], beta2_ref[...]).astype(o_ref.dtype)


def _cls_head_kernel(x_ref, pw_ref, pb_ref, dw_ref, db_ref, ow_ref, ob_ref, o_ref):
    # fused pooler(tanh) -> cls_dense(tanh) -> out_proj (lane-padded output)
    pooled = jnp.tanh(jnp.dot(x_ref[...].astype(jnp.bfloat16), pw_ref[...],
                              preferred_element_type=jnp.float32) + pb_ref[...])
    zz = jnp.tanh(jnp.dot(pooled.astype(jnp.bfloat16), dw_ref[...],
                          preferred_element_type=jnp.float32) + db_ref[...])
    o_ref[...] = (jnp.dot(zz.astype(jnp.bfloat16), ow_ref[...],
                          preferred_element_type=jnp.float32) + ob_ref[...]
                  ).astype(o_ref.dtype)


# ----------------- pallas_call wrappers -----------------
def layernorm_rows(x, g, b):
    M, H = x.shape
    TM = _pick_row_tile(M)
    return pl.pallas_call(
        _layernorm_kernel,
        out_shape=jax.ShapeDtypeStruct((M, H), jnp.float32),
        grid=(M // TM,),
        in_specs=[pl.BlockSpec((TM, H), lambda i: (i, 0)),
                  pl.BlockSpec((1, H), lambda i: (0, 0)),
                  pl.BlockSpec((1, H), lambda i: (0, 0))],
        out_specs=pl.BlockSpec((TM, H), lambda i: (i, 0)),
        compiler_params=_cparams(1),
    )(x, g, b)


def encoder_layer(x, mask_f, layer):
    B, S, H = x.shape
    NH, HD, _ = layer["wo_h"].shape
    I = layer["ffn_w1"].shape[1]
    kernel = functools.partial(_encoder_layer_kernel, num_heads=NH, head_dim=HD,
                               hidden=H, scale=1.0 / (HD ** 0.5))
    return pl.pallas_call(
        kernel,
        out_shape=jax.ShapeDtypeStruct((B, S, H), jnp.float32),
        grid=(B,),
        in_specs=[
            pl.BlockSpec((1, S, H), lambda b: (b, 0, 0)),      # residual hidden
            pl.BlockSpec((1, 1, S), lambda b: (b, 0, 0)),      # attention mask
            pl.BlockSpec((H, 3 * H), lambda b: (0, 0)),        # packed QKV weight (bf16)
            pl.BlockSpec((1, 3 * H), lambda b: (0, 0)),
            pl.BlockSpec((NH, HD, H), lambda b: (0, 0, 0)),    # out-proj W per head (bf16)
            pl.BlockSpec((1, H), lambda b: (0, 0)),
            pl.BlockSpec((1, H), lambda b: (0, 0)),            # attn LN gamma
            pl.BlockSpec((1, H), lambda b: (0, 0)),            # attn LN beta
            pl.BlockSpec((H, I), lambda b: (0, 0)),            # FFN W1 (bf16)
            pl.BlockSpec((1, I), lambda b: (0, 0)),
            pl.BlockSpec((I, H), lambda b: (0, 0)),            # FFN W2 (bf16)
            pl.BlockSpec((1, H), lambda b: (0, 0)),
            pl.BlockSpec((1, H), lambda b: (0, 0)),            # FFN LN gamma
            pl.BlockSpec((1, H), lambda b: (0, 0)),            # FFN LN beta
        ],
        out_specs=pl.BlockSpec((1, S, H), lambda b: (b, 0, 0)),
        compiler_params=_cparams(1),
    )(x, mask_f, layer["wqkv"], layer["bqkv"], layer["wo_h"], layer["bo"],
      layer["attn_ln_g"], layer["attn_ln_b"],
      layer["ffn_w1"], layer["ffn_b1"], layer["ffn_w2"], layer["ffn_b2"],
      layer["ffn_ln_g"], layer["ffn_ln_b"])


def cls_head(x, pw, pb, dw, db, ow, ob):
    B, H = x.shape
    N = ow.shape[1]
    return pl.pallas_call(
        _cls_head_kernel,
        out_shape=jax.ShapeDtypeStruct((B, N), jnp.float32),
        grid=(1,),
        in_specs=[
            pl.BlockSpec((B, H), lambda i: (0, 0)),
            pl.BlockSpec((H, H), lambda i: (0, 0)),
            pl.BlockSpec((1, H), lambda i: (0, 0)),
            pl.BlockSpec((H, H), lambda i: (0, 0)),
            pl.BlockSpec((1, H), lambda i: (0, 0)),
            pl.BlockSpec((H, N), lambda i: (0, 0)),
            pl.BlockSpec((1, N), lambda i: (0, 0)),
        ],
        out_specs=pl.BlockSpec((B, N), lambda i: (0, 0)),
        compiler_params=_cparams(1),
    )(x, pw, pb, dw, db, ow, ob)


# ----------------- parameter init (deterministic, synthetic) -----------------
def init_params(key):
    keys = iter(jax.random.split(key, 64))

    def w(shape):
        return jax.random.normal(next(keys), shape, jnp.float32) * 0.02

    H, I = BERT_HIDDEN, INTERMEDIATE
    out_w = w((H, NUM_LABELS))
    p = {
        "word_emb": w((VOCAB, H)),
        "pos_emb": w((MAX_POS, H)),
        "type_emb": w((TYPE_VOCAB, H)),
        "emb_ln_g": jnp.ones((1, H), jnp.float32),
        "emb_ln_b": jnp.zeros((1, H), jnp.float32),
        # classification path (weights stored bf16 for MXU; biases f32)
        "pooler_w": w((H, H)).astype(jnp.bfloat16),
        "pooler_b": jnp.zeros((1, H), jnp.float32),
        "cls_dense_w": w((H, H)).astype(jnp.bfloat16),
        "cls_dense_b": jnp.zeros((1, H), jnp.float32),
        "out_w_pad": jnp.zeros((H, LANE_PAD), jnp.float32)
                        .at[:, :NUM_LABELS].set(out_w).astype(jnp.bfloat16),
        "out_b_pad": jnp.zeros((1, LANE_PAD), jnp.float32),
        "layers": [],
    }
    for _ in range(NUM_LAYERS):
        wq, wk, wv, wo = w((H, H)), w((H, H)), w((H, H)), w((H, H))
        p["layers"].append({
            "wqkv": jnp.concatenate([wq, wk, wv], axis=1).astype(jnp.bfloat16),
            "bqkv": jnp.zeros((1, 3 * H), jnp.float32),
            "wo_h": wo.reshape(NUM_HEADS, HEAD_DIM, H).astype(jnp.bfloat16),
            "bo": jnp.zeros((1, H), jnp.float32),
            "attn_ln_g": jnp.ones((1, H), jnp.float32),
            "attn_ln_b": jnp.zeros((1, H), jnp.float32),
            "ffn_w1": w((H, I)).astype(jnp.bfloat16),
            "ffn_b1": jnp.zeros((1, I), jnp.float32),
            "ffn_w2": w((I, H)).astype(jnp.bfloat16),
            "ffn_b2": jnp.zeros((1, H), jnp.float32),
            "ffn_ln_g": jnp.ones((1, H), jnp.float32),
            "ffn_ln_b": jnp.zeros((1, H), jnp.float32),
        })
    return p


# ----------------- forward pass -----------------
def roberta_for_sequence_classification(params, input_ids, input_mask):
    B, S = input_ids.shape
    H = BERT_HIDDEN
    M = B * S
    mask_i = input_mask.astype(jnp.int32)

    # RoBERTa position ids: padding_idx + cumsum(mask) on non-pad tokens
    # TODO(synk): can exceed MAX_POS for long sequences (real RoBERTa uses 512+2).
    position_ids = jnp.cumsum(mask_i, axis=1) * mask_i + PAD_TOKEN_ID

    emb = (params["word_emb"][input_ids]
           + params["pos_emb"][position_ids]
           + params["type_emb"][jnp.zeros_like(input_ids)])
    h = layernorm_rows(emb.reshape(M, H),
                       params["emb_ln_g"], params["emb_ln_b"]).reshape(B, S, H)

    mask_f = input_mask.astype(jnp.float32).reshape(B, 1, S)

    # one fused pallas_call per transformer layer
    for layer in params["layers"]:
        h = encoder_layer(h, mask_f, layer)

    # pooled output = tanh(dense(hidden_states[:, 0]))   (== outputs_single[1])
    cls_tok = h[:, 0, :]                                          # (B, H)
    # RobertaClassificationHead: dropout(id) -> dense -> tanh -> dropout(id) -> out_proj
    logits_padded = cls_head(cls_tok, params["pooler_w"], params["pooler_b"],
                             params["cls_dense_w"], params["cls_dense_b"],
                             params["out_w_pad"], params["out_b_pad"])
    return logits_padded[:, :NUM_LABELS]                          # (B, NUM_LABELS)


# ----------------- main -----------------
if __name__ == "__main__":
    key = jax.random.PRNGKey(0)
    pkey, ikey = jax.random.split(key)

    params = init_params(pkey)

    B, S = 2, 8
    input_ids = jax.random.randint(ikey, (B, S), 2, VOCAB, dtype=jnp.int32)
    # mask a couple of trailing positions in the second example
    input_mask = jnp.array(
        [[1, 1, 1, 1, 1, 1, 1, 1],
         [1, 1, 1, 1, 1, 1, 0, 0]], dtype=jnp.int32)

    fwd = jax.jit(roberta_for_sequence_classification)
    logits = fwd(params, input_ids, input_mask)
    logits = jax.block_until_ready(logits)
    assert logits.shape == (B, NUM_LABELS) and logits.dtype == jnp.float32
    print("KERNEL_OK")
</pallas_src>

<mosaic_0001>
module attributes {stable_mosaic.version = 11 : i64} {
  func.func @_layernorm_kernel(%arg0: i32, %arg1: memref<8x32xf32, #tpu.memory_space<vmem>>, %arg2: memref<1x32xf32, #tpu.memory_space<vmem>>, %arg3: memref<1x32xf32, #tpu.memory_space<vmem>>, %arg4: memref<8x32xf32, #tpu.memory_space<vmem>>) attributes {dimension_semantics = [#tpu.dimension_semantics<parallel>], iteration_bounds = array<i64: 2>, scalar_prefetch = 0 : i64, scratch_operands = 0 : i64, tpu.core_type = #tpu.core_type<tc>, window_params = [{transform_indices = @transform_0, window_bounds = array<i64: 8, 32>}, {pipeline_mode = #tpu.pipeline_mode<synchronous>, transform_indices = @transform_1, window_bounds = array<i64: 1, 32>}, {pipeline_mode = #tpu.pipeline_mode<synchronous>, transform_indices = @transform_2, window_bounds = array<i64: 1, 32>}, {transform_indices = @transform_3, window_bounds = array<i64: 8, 32>}]} {
    %c0 = arith.constant 0 : index
    %c0_0 = arith.constant 0 : index
    %0 = vector.load %arg1[%c0, %c0_0] : memref<8x32xf32, #tpu.memory_space<vmem>>, vector<8x32xf32>
    %c0_1 = arith.constant 0 : index
    %c0_2 = arith.constant 0 : index
    %1 = vector.load %arg2[%c0_1, %c0_2] : memref<1x32xf32, #tpu.memory_space<vmem>>, vector<1x32xf32>
    %c0_3 = arith.constant 0 : index
    %c0_4 = arith.constant 0 : index
    %2 = vector.load %arg3[%c0_3, %c0_4] : memref<1x32xf32, #tpu.memory_space<vmem>>, vector<1x32xf32>
    %cst = arith.constant dense<0.000000e+00> : vector<8xf32>
    %3 = vector.multi_reduction <add>, %0, %cst [1] : vector<8x32xf32> to vector<8xf32>
    %4 = vector.shape_cast %3 : vector<8xf32> to vector<8x1xf32>
    %cst_5 = arith.constant 3.200000e+01 : f32
    %5 = vector.broadcast %cst_5 : f32 to vector<8x1xf32>
    %6 = arith.divf %4, %5 : vector<8x1xf32>
    %7 = vector.broadcast %6 : vector<8x1xf32> to vector<8x32xf32>
    %8 = arith.subf %0, %7 : vector<8x32xf32>
    %9 = arith.mulf %8, %8 : vector<8x32xf32>
    %cst_6 = arith.constant dense<0.000000e+00> : vector<8xf32>
    %10 = vector.multi_reduction <add>, %9, %cst_6 [1] : vector<8x32xf32> to vector<8xf32>
    %11 = vector.shape_cast %10 : vector<8xf32> to vector<8x1xf32>
    %cst_7 = arith.constant 3.200000e+01 : f32
    %12 = vector.broadcast %cst_7 : f32 to vector<8x1xf32>
    %13 = arith.divf %11, %12 : vector<8x1xf32>
    %14 = vector.broadcast %6 : vector<8x1xf32> to vector<8x32xf32>
    %15 = arith.subf %0, %14 : vector<8x32xf32>
    %cst_8 = arith.constant 9.99999974E-6 : f32
    %16 = vector.broadcast %cst_8 : f32 to vector<8x1xf32>
    %17 = arith.addf %13, %16 : vector<8x1xf32>
    %18 = math.rsqrt %17 : vector<8x1xf32>
    %19 = vector.broadcast %18 : vector<8x1xf32> to vector<8x32xf32>
    %20 = arith.mulf %15, %19 : vector<8x32xf32>
    %21 = vector.broadcast %1 : vector<1x32xf32> to vector<8x32xf32>
    %22 = arith.mulf %20, %21 : vector<8x32xf32>
    %23 = vector.broadcast %2 : vector<1x32xf32> to vector<8x32xf32>
    %24 = arith.addf %22, %23 : vector<8x32xf32>
    %c0_9 = arith.constant 0 : index
    %c0_10 = arith.constant 0 : index
    %25 = vector.load %arg4[%c0_9, %c0_10] : memref<8x32xf32, #tpu.memory_space<vmem>>, vector<8x32xf32>
    tpu.vector_store %arg4[%c0_9, %c0_10], %24 {strides = array<i32>} : memref<8x32xf32, #tpu.memory_space<vmem>>, vector<8x32xf32>,
    return
  }
  func.func @transform_0(%arg0: i32) -> (i32, i32) {
    %c0_i32 = arith.constant 0 : i32
    %c0_i32_0 = arith.constant 0 : i32
    return %arg0, %c0_i32 : i32, i32
  }
  func.func @transform_1(%arg0: i32) -> (i32, i32) {
    %c0_i32 = arith.constant 0 : i32
    %c0_i32_0 = arith.constant 0 : i32
    %c0_i32_1 = arith.constant 0 : i32
    return %c0_i32, %c0_i32_0 : i32, i32
  }
  func.func @transform_2(%arg0: i32) -> (i32, i32) {
    %c0_i32 = arith.constant 0 : i32
    %c0_i32_0 = arith.constant 0 : i32
    %c0_i32_1 = arith.constant 0 : i32
    return %c0_i32, %c0_i32_0 : i32, i32
  }
  func.func @transform_3(%arg0: i32) -> (i32, i32) {
    %c0_i32 = arith.constant 0 : i32
    %c0_i32_0 = arith.constant 0 : i32
    return %arg0, %c0_i32 : i32, i32
  }
}

module attributes {stable_mosaic.version = 11 : i64} {
  func.func @_cls_head_kernel(%arg0: i32, %arg1: memref<2x32xf32, #tpu.memory_space<vmem>>, %arg2: memref<32x32xbf16, #tpu.memory_space<vmem>>, %arg3: memref<1x32xf32, #tpu.memory_space<vmem>>, %arg4: memref<32x32xbf16, #tpu.memory_space<vmem>>, %arg5: memref<1x32xf32, #tpu.memory_space<vmem>>, %arg6: memref<32x128xbf16, #tpu.memory_space<vmem>>, %arg7: memref<1x128xf32, #tpu.memory_space<vmem>>, %arg8: memref<2x128xf32, #tpu.memory_space<vmem>>) attributes {dimension_semantics = [#tpu.dimension_semantics<parallel>], iteration_bounds = array<i64: 1>, scalar_prefetch = 0 : i64, scratch_operands = 0 : i64, tpu.core_type = #tpu.core_type<tc>, window_params = [{pipeline_mode = #tpu.pipeline_mode<synchronous>, transform_indices = @transform_0, window_bounds = array<i64: 2, 32>}, {pipeline_mode = #tpu.pipeline_mode<synchronous>, transform_indices = @transform_1, window_bounds = array<i64: 32, 32>}, {pipeline_mode = #tpu.pipeline_mode<synchronous>, transform_indices = @transform_2, window_bounds = array<i64: 1, 32>}, {pipeline_mode = #tpu.pipeline_mode<synchronous>, transform_indices = @transform_3, window_bounds = array<i64: 32, 32>}, {pipeline_mode = #tpu.pipeline_mode<synchronous>, transform_indices = @transform_4, window_bounds = array<i64: 1, 32>}, {pipeline_mode = #tpu.pipeline_mode<synchronous>, transform_indices = @transform_5, window_bounds = array<i64: 32, 128>}, {pipeline_mode = #tpu.pipeline_mode<synchronous>, transform_indices = @transform_6, window_bounds = array<i64: 1, 128>}, {pipeline_mode = #tpu.pipeline_mode<synchronous>, transform_indices = @transform_7, window_bounds = array<i64: 2, 128>}]} {
    %c0 = arith.constant 0 : index
    %c0_0 = arith.constant 0 : index
    %0 = vector.load %arg1[%c0, %c0_0] : memref<2x32xf32, #tpu.memory_space<vmem>>, vector<2x32xf32>
    %1 = arith.truncf %0 : vector<2x32xf32> to vector<2x32xbf16>
    %c0_1 = arith.constant 0 : index
    %c0_2 = arith.constant 0 : index
    %2 = vector.load %arg2[%c0_1, %c0_2] : memref<32x32xbf16, #tpu.memory_space<vmem>>, vector<32x32xbf16>
    %cst = arith.constant dense<0.000000e+00> : vector<2x32xf32>
    %3 = tpu.matmul %1, %2, %cst {dimension_numbers = #tpu.dot_dimension_numbers<[1], [0], [0], [1], [0, 0, 1, 1], [], []>} : vector<2x32xbf16>, vector<32x32xbf16>, vector<2x32xf32> -> vector<2x32xf32>
    %c0_3 = arith.constant 0 : index
    %c0_4 = arith.constant 0 : index
    %4 = vector.load %arg3[%c0_3, %c0_4] : memref<1x32xf32, #tpu.memory_space<vmem>>, vector<1x32xf32>
    %5 = vector.broadcast %4 : vector<1x32xf32> to vector<2x32xf32>
    %6 = arith.addf %3, %5 : vector<2x32xf32>
    %7 = math.tanh %6 : vector<2x32xf32>
    %8 = arith.truncf %7 : vector<2x32xf32> to vector<2x32xbf16>
    %c0_5 = arith.constant 0 : index
    %c0_6 = arith.constant 0 : index
    %9 = vector.load %arg4[%c0_5, %c0_6] : memref<32x32xbf16, #tpu.memory_space<vmem>>, vector<32x32xbf16>
    %cst_7 = arith.constant dense<0.000000e+00> : vector<2x32xf32>
    %10 = tpu.matmul %8, %9, %cst_7 {dimension_numbers = #tpu.dot_dimension_numbers<[1], [0], [0], [1], [0, 0, 1, 1], [], []>} : vector<2x32xbf16>, vector<32x32xbf16>, vector<2x32xf32> -> vector<2x32xf32>
    %c0_8 = arith.constant 0 : index
    %c0_9 = arith.constant 0 : index
    %11 = vector.load %arg5[%c0_8, %c0_9] : memref<1x32xf32, #tpu.memory_space<vmem>>, vector<1x32xf32>
    %12 = vector.broadcast %11 : vector<1x32xf32> to vector<2x32xf32>
    %13 = arith.addf %10, %12 : vector<2x32xf32>
    %14 = math.tanh %13 : vector<2x32xf32>
    %15 = arith.truncf %14 : vector<2x32xf32> to vector<2x32xbf16>
    %c0_10 = arith.constant 0 : index
    %c0_11 = arith.constant 0 : index
    %16 = vector.load %arg6[%c0_10, %c0_11] : memref<32x128xbf16, #tpu.memory_space<vmem>>, vector<32x128xbf16>
    %cst_12 = arith.constant dense<0.000000e+00> : vector<2x128xf32>
    %17 = tpu.matmul %15, %16, %cst_12 {dimension_numbers = #tpu.dot_dimension_numbers<[1], [0], [0], [1], [0, 0, 1, 1], [], []>} : vector<2x32xbf16>, vector<32x128xbf16>, vector<2x128xf32> -> vector<2x128xf32>
    %c0_13 = arith.constant 0 : index
    %c0_14 = arith.constant 0 : index
    %18 = vector.load %arg7[%c0_13, %c0_14] : memref<1x128xf32, #tpu.memory_space<vmem>>, vector<1x128xf32>
    %19 = vector.broadcast %18 : vector<1x128xf32> to vector<2x128xf32>
    %20 = arith.addf %17, %19 : vector<2x128xf32>
    %c0_15 = arith.constant 0 : index
    %c0_16 = arith.constant 0 : index
    %21 = vector.load %arg8[%c0_15, %c0_16] : memref<2x128xf32, #tpu.memory_space<vmem>>, vector<2x128xf32>
    tpu.vector_store %arg8[%c0_15, %c0_16], %20 {strides = array<i32>} : memref<2x128xf32, #tpu.memory_space<vmem>>, vector<2x128xf32>,
    return
  }
  func.func @transform_0(%arg0: i32) -> (i32, i32) {
    %c0_i32 = arith.constant 0 : i32
    %c0_i32_0 = arith.constant 0 : i32
    %c0_i32_1 = arith.constant 0 : i32
    return %c0_i32, %c0_i32_0 : i32, i32
  }
  func.func @transform_1(%arg0: i32) -> (i32, i32) {
    %c0_i32 = arith.constant 0 : i32
    %c0_i32_0 = arith.constant 0 : i32
    %c0_i32_1 = arith.constant 0 : i32
    return %c0_i32, %c0_i32_0 : i32, i32
  }
  func.func @transform_2(%arg0: i32) -> (i32, i32) {
    %c0_i32 = arith.constant 0 : i32
    %c0_i32_0 = arith.constant 0 : i32
    %c0_i32_1 = arith.constant 0 : i32
    return %c0_i32, %c0_i32_0 : i32, i32
  }
  func.func @transform_3(%arg0: i32) -> (i32, i32) {
    %c0_i32 = arith.constant 0 : i32
    %c0_i32_0 = arith.constant 0 : i32
    %c0_i32_1 = arith.constant 0 : i32
    return %c0_i32, %c0_i32_0 : i32, i32
  }
  func.func @transform_4(%arg0: i32) -> (i32, i32) {
    %c0_i32 = arith.constant 0 : i32
    %c0_i32_0 = arith.constant 0 : i32
    %c0_i32_1 = arith.constant 0 : i32
    return %c0_i32, %c0_i32_0 : i32, i32
  }
  func.func @transform_5(%arg0: i32) -> (i32, i32) {
    %c0_i32 = arith.constant 0 : i32
    %c0_i32_0 = arith.constant 0 : i32
    %c0_i32_1 = arith.constant 0 : i32
    return %c0_i32, %c0_i32_0 : i32, i32
  }
  func.func @transform_6(%arg0: i32) -> (i32, i32) {
    %c0_i32 = arith.constant 0 : i32
    %c0_i32_0 = arith.constant 0 : i32
    %c0_i32_1 = arith.constant 0 : i32
    return %c0_i32, %c0_i32_0 : i32, i32
  }
  func.func @transform_7(%arg0: i32) -> (i32, i32) {
    %c0_i32 = arith.constant 0 : i32
    %c0_i32_0 = arith.constant 0 : i32
    %c0_i32_1 = arith.constant 0 : i32
    return %c0_i32, %c0_i32_0 : i32, i32
  }
}

module attributes {stable_mosaic.version = 11 : i64} {
  func.func @_encoder_layer_kernel(%arg0: i32, %arg1: memref<1x8x32xf32, #tpu.memory_space<vmem>>, %arg2: memref<1x1x8xf32, #tpu.memory_space<vmem>>, %arg3: memref<32x96xbf16, #tpu.memory_space<vmem>>, %arg4: memref<1x96xf32, #tpu.memory_space<vmem>>, %arg5: memref<4x8x32xbf16, #tpu.memory_space<vmem>>, %arg6: memref<1x32xf32, #tpu.memory_space<vmem>>, %arg7: memref<1x32xf32, #tpu.memory_space<vmem>>, %arg8: memref<1x32xf32, #tpu.memory_space<vmem>>, %arg9: memref<32x64xbf16, #tpu.memory_space<vmem>>, %arg10: memref<1x64xf32, #tpu.memory_space<vmem>>, %arg11: memref<64x32xbf16, #tpu.memory_space<vmem>>, %arg12: memref<1x32xf32, #tpu.memory_space<vmem>>, %arg13: memref<1x32xf32, #tpu.memory_space<vmem>>, %arg14: memref<1x32xf32, #tpu.memory_space<vmem>>, %arg15: memref<1x8x32xf32, #tpu.memory_space<vmem>>) attributes {dimension_semantics = [#tpu.dimension_semantics<parallel>], iteration_bounds = array<i64: 2>, scalar_prefetch = 0 : i64, scratch_operands = 0 : i64, tpu.core_type = #tpu.core_type<tc>, window_params = [{transform_indices = @transform_0, window_bounds = array<i64: 1, 8, 32>}, {transform_indices = @transform_1, window_bounds = array<i64: 1, 1, 8>}, {pipeline_mode = #tpu.pipeline_mode<synchronous>, transform_indices = @transform_2, window_bounds = array<i64: 32, 96>}, {pipeline_mode = #tpu.pipeline_mode<synchronous>, transform_indices = @transform_3, window_bounds = array<i64: 1, 96>}, {pipeline_mode = #tpu.pipeline_mode<synchronous>, transform_indices = @transform_4, window_bounds = array<i64: 4, 8, 32>}, {pipeline_mode = #tpu.pipeline_mode<synchronous>, transform_indices = @transform_5, window_bounds = array<i64: 1, 32>}, {pipeline_mode = #tpu.pipeline_mode<synchronous>, transform_indices = @transform_6, window_bounds = array<i64: 1, 32>}, {pipeline_mode = #tpu.pipeline_mode<synchronous>, transform_indices = @transform_7, window_bounds = array<i64: 1, 32>}, {pipeline_mode = #tpu.pipeline_mode<synchronous>, transform_indices = @transform_8, window_bounds = array<i64: 32, 64>}, {pipeline_mode = #tpu.pipeline_mode<synchronous>, transform_indices = @transform_9, window_bounds = array<i64: 1, 64>}, {pipeline_mode = #tpu.pipeline_mode<synchronous>, transform_indices = @transform_10, window_bounds = array<i64: 64, 32>}, {pipeline_mode = #tpu.pipeline_mode<synchronous>, transform_indices = @transform_11, window_bounds = array<i64: 1, 32>}, {pipeline_mode = #tpu.pipeline_mode<synchronous>, transform_indices = @transform_12, window_bounds = array<i64: 1, 32>}, {pipeline_mode = #tpu.pipeline_mode<synchronous>, transform_indices = @transform_13, window_bounds = array<i64: 1, 32>}, {transform_indices = @transform_14, window_bounds = array<i64: 1, 8, 32>}]} {
    %c0 = arith.constant 0 : index
    %c0_0 = arith.constant 0 : index
    %c0_1 = arith.constant 0 : index
    %0 = vector.load %arg1[%c0, %c0_0, %c0_1] : memref<1x8x32xf32, #tpu.memory_space<vmem>>, vector<1x8x32xf32>
    %1 = vector.shape_cast %0 : vector<1x8x32xf32> to vector<8x32xf32>
    %2 = arith.truncf %1 : vector<8x32xf32> to vector<8x32xbf16>
    %c0_2 = arith.constant 0 : index
    %c0_3 = arith.constant 0 : index
    %3 = vector.load %arg3[%c0_2, %c0_3] : memref<32x96xbf16, #tpu.memory_space<vmem>>, vector<32x96xbf16>
    %cst = arith.constant dense<0.000000e+00> : vector<8x96xf32>
    %4 = tpu.matmul %2, %3, %cst {dimension_numbers = #tpu.dot_dimension_numbers<[1], [0], [0], [1], [0, 0, 1, 1], [], []>} : vector<8x32xbf16>, vector<32x96xbf16>, vector<8x96xf32> -> vector<8x96xf32>
    %c0_4 = arith.constant 0 : index
    %c0_5 = arith.constant 0 : index
    %5 = vector.load %arg4[%c0_4, %c0_5] : memref<1x96xf32, #tpu.memory_space<vmem>>, vector<1x96xf32>
    %6 = vector.broadcast %5 : vector<1x96xf32> to vector<8x96xf32>
    %7 = arith.addf %4, %6 : vector<8x96xf32>
    %8 = arith.truncf %7 : vector<8x96xf32> to vector<8x96xbf16>
    %c0_6 = arith.constant 0 : index
    %c0_7 = arith.constant 0 : index
    %c0_8 = arith.constant 0 : index
    %9 = vector.load %arg2[%c0_6, %c0_7, %c0_8] : memref<1x1x8xf32, #tpu.memory_space<vmem>>, vector<1x1x8xf32>
    %10 = vector.shape_cast %9 : vector<1x1x8xf32> to vector<1x8xf32>
    %cst_9 = arith.constant 1.000000e+00 : f32
    %11 = vector.broadcast %cst_9 : f32 to vector<1x8xf32>
    %12 = arith.subf %11, %10 : vector<1x8xf32>
    %cst_10 = arith.constant -1.000000e+04 : f32
    %13 = vector.broadcast %cst_10 : f32 to vector<1x8xf32>
    %14 = arith.mulf %12, %13 : vector<1x8xf32>
    %c0_11 = arith.constant 0 : index
    %c0_12 = arith.constant 0 : index
    %15 = vector.load %arg6[%c0_11, %c0_12] : memref<1x32xf32, #tpu.memory_space<vmem>>, vector<1x32xf32>
    %16 = vector.broadcast %15 : vector<1x32xf32> to vector<8x32xf32>
    %17 = arith.addf %16, %1 : vector<8x32xf32>
    %18 = vector.extract_strided_slice %8 {offsets = [0, 0], sizes = [8, 8], strides = [1, 1]} : vector<8x96xbf16> to vector<8x8xbf16>
    %19 = vector.extract_strided_slice %8 {offsets = [0, 32], sizes = [8, 8], strides = [1, 1]} : vector<8x96xbf16> to vector<8x8xbf16>
    %20 = vector.extract_strided_slice %8 {offsets = [0, 64], sizes = [8, 8], strides = [1, 1]} : vector<8x96xbf16> to vector<8x8xbf16>
    %cst_13 = arith.constant dense<0.000000e+00> : vector<8x8xf32>
    %21 = tpu.matmul %18, %19, %cst_13 {dimension_numbers = #tpu.dot_dimension_numbers<[1], [1], [0], [0], [0, 0, 1, 0], [], []>} : vector<8x8xbf16>, vector<8x8xbf16>, vector<8x8xf32> -> vector<8x8xf32>
    %cst_14 = arith.constant 0.353553385 : f32
    %22 = vector.broadcast %cst_14 : f32 to vector<8x8xf32>
    %23 = arith.mulf %21, %22 : vector<8x8xf32>
    %24 = vector.broadcast %14 : vector<1x8xf32> to vector<8x8xf32>
    %25 = arith.addf %23, %24 : vector<8x8xf32>
    %cst_15 = arith.constant dense<0xFF800000> : vector<8xf32>
    %26 = vector.multi_reduction <maximumf>, %25, %cst_15 [1] : vector<8x8xf32> to vector<8xf32>
    %27 = vector.shape_cast %26 : vector<8xf32> to vector<8x1xf32>
    %28 = vector.broadcast %27 : vector<8x1xf32> to vector<8x8xf32>
    %29 = arith.subf %25, %28 : vector<8x8xf32>
    %30 = math.exp %29 : vector<8x8xf32>
    %cst_16 = arith.constant dense<0.000000e+00> : vector<8xf32>
    %31 = vector.multi_reduction <add>, %30, %cst_16 [1] : vector<8x8xf32> to vector<8xf32>
    %32 = vector.shape_cast %31 : vector<8xf32> to vector<8x1xf32>
    %33 = tpu.reciprocal %32 {approx = true} : vector<8x1xf32> -> vector<8x1xf32>
    %34 = vector.broadcast %33 : vector<8x1xf32> to vector<8x8xf32>
    %35 = arith.mulf %30, %34 : vector<8x8xf32>
    %36 = arith.truncf %35 : vector<8x8xf32> to vector<8x8xbf16>
    %cst_17 = arith.constant dense<0.000000e+00> : vector<8x8xf32>
    %37 = tpu.matmul %36, %20, %cst_17 {dimension_numbers = #tpu.dot_dimension_numbers<[1], [0], [0], [1], [0, 0, 1, 1], [], []>} : vector<8x8xbf16>, vector<8x8xbf16>, vector<8x8xf32> -> vector<8x8xf32>
    %38 = arith.truncf %37 : vector<8x8xf32> to vector<8x8xbf16>
    %c0_18 = arith.constant 0 : index
    %c0_19 = arith.constant 0 : index
    %c0_20 = arith.constant 0 : index
    %39 = vector.load %arg5[%c0_18, %c0_19, %c0_20] : memref<4x8x32xbf16, #tpu.memory_space<vmem>>, vector<1x8x32xbf16>
    %40 = vector.shape_cast %39 : vector<1x8x32xbf16> to vector<8x32xbf16>
    %cst_21 = arith.constant dense<0.000000e+00> : vector<8x32xf32>
    %41 = tpu.matmul %38, %40, %cst_21 {dimension_numbers = #tpu.dot_dimension_numbers<[1], [0], [0], [1], [0, 0, 1, 1], [], []>} : vector<8x8xbf16>, vector<8x32xbf16>, vector<8x32xf32> -> vector<8x32xf32>
    %42 = arith.addf %17, %41 : vector<8x32xf32>
    %43 = vector.extract_strided_slice %8 {offsets = [0, 8], sizes = [8, 8], strides = [1, 1]} : vector<8x96xbf16> to vector<8x8xbf16>
    %44 = vector.extract_strided_slice %8 {offsets = [0, 40], sizes = [8, 8], strides = [1, 1]} : vector<8x96xbf16> to vector<8x8xbf16>
    %45 = vector.extract_strided_slice %8 {offsets = [0, 72], sizes = [8, 8], strides = [1, 1]} : vector<8x96xbf16> to vector<8x8xbf16>
    %cst_22 = arith.constant dense<0.000000e+00> : vector<8x8xf32>
    %46 = tpu.matmul %43, %44, %cst_22 {dimension_numbers = #tpu.dot_dimension_numbers<[1], [1], [0], [0], [0, 0, 1, 0], [], []>} : vector<8x8xbf16>, vector<8x8xbf16>, vector<8x8xf32> -> vector<8x8xf32>
    %cst_23 = arith.constant 0.353553385 : f32
    %47 = vector.broadcast %cst_23 : f32 to vector<8x8xf32>
    %48 = arith.mulf %46, %47 : vector<8x8xf32>
    %49 = vector.broadcast %14 : vector<1x8xf32> to vector<8x8xf32>
    %50 = arith.addf %48, %49 : vector<8x8xf32>
    %cst_24 = arith.constant dense<0xFF800000> : vector<8xf32>
    %51 = vector.multi_reduction <maximumf>, %50, %cst_24 [1] : vector<8x8xf32> to vector<8xf32>
    %52 = vector.shape_cast %51 : vector<8xf32> to vector<8x1xf32>
    %53 = vector.broadcast %52 : vector<8x1xf32> to vector<8x8xf32>
    %54 = arith.subf %50, %53 : vector<8x8xf32>
    %55 = math.exp %54 : vector<8x8xf32>
    %cst_25 = arith.constant dense<0.000000e+00> : vector<8xf32>
    %56 = vector.multi_reduction <add>, %55, %cst_25 [1] : vector<8x8xf32> to vector<8xf32>
    %57 = vector.shape_cast %56 : vector<8xf32> to vector<8x1xf32>
    %58 = tpu.reciprocal %57 {approx = true} : vector<8x1xf32> -> vector<8x1xf32>
    %59 = vector.broadcast %58 : vector<8x1xf32> to vector<8x8xf32>
    %60 = arith.mulf %55, %59 : vector<8x8xf32>
    %61 = arith.truncf %60 : vector<8x8xf32> to vector<8x8xbf16>
    %cst_26 = arith.constant dense<0.000000e+00> : vector<8x8xf32>
    %62 = tpu.matmul %61, %45, %cst_26 {dimension_numbers = #tpu.dot_dimension_numbers<[1], [0], [0], [1], [0, 0, 1, 1], [], []>} : vector<8x8xbf16>, vector<8x8xbf16>, vector<8x8xf32> -> vector<8x8xf32>
    %63 = arith.truncf %62 : vector<8x8xf32> to vector<8x8xbf16>
    %c1 = arith.constant 1 : index
    %c0_27 = arith.constant 0 : index
    %c0_28 = arith.constant 0 : index
    %64 = vector.load %arg5[%c1, %c0_27, %c0_28] : memref<4x8x32xbf16, #tpu.memory_space<vmem>>, vector<1x8x32xbf16>
    %65 = vector.shape_cast %64 : vector<1x8x32xbf16> to vector<8x32xbf16>
    %cst_29 = arith.constant dense<0.000000e+00> : vector<8x32xf32>
    %66 = tpu.matmul %63, %65, %cst_29 {dimension_numbers = #tpu.dot_dimension_numbers<[1], [0], [0], [1], [0, 0, 1, 1], [], []>} : vector<8x8xbf16>, vector<8x32xbf16>, vector<8x32xf32> -> vector<8x32xf32>
    %67 = arith.addf %42, %66 : vector<8x32xf32>
    %68 = vector.extract_strided_slice %8 {offsets = [0, 16], sizes = [8, 8], strides = [1, 1]} : vector<8x96xbf16> to vector<8x8xbf16>
    %69 = vector.extract_strided_slice %8 {offsets = [0, 48], sizes = [8, 8], strides = [1, 1]} : vector<8x96xbf16> to vector<8x8xbf16>
    %70 = vector.extract_strided_slice %8 {offsets = [0, 80], sizes = [8, 8], strides = [1, 1]} : vector<8x96xbf16> to vector<8x8xbf16>
    %cst_30 = arith.constant dense<0.000000e+00> : vector<8x8xf32>
    %71 = tpu.matmul %68, %69, %cst_30 {dimension_numbers = #tpu.dot_dimension_numbers<[1], [1], [0], [0], [0, 0, 1, 0], [], []>} : vector<8x8xbf16>, vector<8x8xbf16>, vector<8x8xf32> -> vector<8x8xf32>
    %cst_31 = arith.constant 0.353553385 : f32
    %72 = vector.broadcast %cst_31 : f32 to vector<8x8xf32>
    %73 = arith.mulf %71, %72 : vector<8x8xf32>
    %74 = vector.broadcast %14 : vector<1x8xf32> to vector<8x8xf32>
    %75 = arith.addf %73, %74 : vector<8x8xf32>
    %cst_32 = arith.constant dense<0xFF800000> : vector<8xf32>
    %76 = vector.multi_reduction <maximumf>, %75, %cst_32 [1] : vector<8x8xf32> to vector<8xf32>
    %77 = vector.shape_cast %76 : vector<8xf32> to vector<8x1xf32>
    %78 = vector.broadcast %77 : vector<8x1xf32> to vector<8x8xf32>
    %79 = arith.subf %75, %78 : vector<8x8xf32>
    %80 = math.exp %79 : vector<8x8xf32>
    %cst_33 = arith.constant dense<0.000000e+00> : vector<8xf32>
    %81 = vector.multi_reduction <add>, %80, %cst_33 [1] : vector<8x8xf32> to vector<8xf32>
    %82 = vector.shape_cast %81 : vector<8xf32> to vector<8x1xf32>
    %83 = tpu.reciprocal %82 {approx = true} : vector<8x1xf32> -> vector<8x1xf32>
    %84 = vector.broadcast %83 : vector<8x1xf32> to vector<8x8xf32>
    %85 = arith.mulf %80, %84 : vector<8x8xf32>
    %86 = arith.truncf %85 : vector<8x8xf32> to vector<8x8xbf16>
    %cst_34 = arith.constant dense<0.000000e+00> : vector<8x8xf32>
    %87 = tpu.matmul %86, %70, %cst_34 {dimension_numbers = #tpu.dot_dimension_numbers<[1], [0], [0], [1], [0, 0, 1, 1], [], []>} : vector<8x8xbf16>, vector<8x8xbf16>, vector<8x8xf32> -> vector<8x8xf32>
    %88 = arith.truncf %87 : vector<8x8xf32> to vector<8x8xbf16>
    %c2 = arith.constant 2 : index
    %c0_35 = arith.constant 0 : index
    %c0_36 = arith.constant 0 : index
    %89 = vector.load %arg5[%c2, %c0_35, %c0_36] : memref<4x8x32xbf16, #tpu.memory_space<vmem>>, vector<1x8x32xbf16>
    %90 = vector.shape_cast %89 : vector<1x8x32xbf16> to vector<8x32xbf16>
    %cst_37 = arith.constant dense<0.000000e+00> : vector<8x32xf32>
    %91 = tpu.matmul %88, %90, %cst_37 {dimension_numbers = #tpu.dot_dimension_numbers<[1], [0], [0], [1], [0, 0, 1, 1], [], []>} : vector<8x8xbf16>, vector<8x32xbf16>, vector<8x32xf32> -> vector<8x32xf32>
    %92 = arith.addf %67, %91 : vector<8x32xf32>
    %93 = vector.extract_strided_slice %8 {offsets = [0, 24], sizes = [8, 8], strides = [1, 1]} : vector<8x96xbf16> to vector<8x8xbf16>
    %94 = vector.extract_strided_slice %8 {offsets = [0, 56], sizes = [8, 8], strides = [1, 1]} : vector<8x96xbf16> to vector<8x8xbf16>
    %95 = vector.extract_strided_slice %8 {offsets = [0, 88], sizes = [8, 8], strides = [1, 1]} : vector<8x96xbf16> to vector<8x8xbf16>
    %cst_38 = arith.constant dense<0.000000e+00> : vector<8x8xf32>
    %96 = tpu.matmul %93, %94, %cst_38 {dimension_numbers = #tpu.dot_dimension_numbers<[1], [1], [0], [0], [0, 0, 1, 0], [], []>} : vector<8x8xbf16>, vector<8x8xbf16>, vector<8x8xf32> -> vector<8x8xf32>
    %cst_39 = arith.constant 0.353553385 : f32
    %97 = vector.broadcast %cst_39 : f32 to vector<8x8xf32>
    %98 = arith.mulf %96, %97 : vector<8x8xf32>
    %99 = vector.broadcast %14 : vector<1x8xf32> to vector<8x8xf32>
    %100 = arith.addf %98, %99 : vector<8x8xf32>
    %cst_40 = arith.constant dense<0xFF800000> : vector<8xf32>
    %101 = vector.multi_reduction <maximumf>, %100, %cst_40 [1] : vector<8x8xf32> to vector<8xf32>
    %102 = vector.shape_cast %101 : vector<8xf32> to vector<8x1xf32>
    %103 = vector.broadcast %102 : vector<8x1xf32> to vector<8x8xf32>
    %104 = arith.subf %100, %103 : vector<8x8xf32>
    %105 = math.exp %104 : vector<8x8xf32>
    %cst_41 = arith.constant dense<0.000000e+00> : vector<8xf32>
    %106 = vector.multi_reduction <add>, %105, %cst_41 [1] : vector<8x8xf32> to vector<8xf32>
    %107 = vector.shape_cast %106 : vector<8xf32> to vector<8x1xf32>
    %108 = tpu.reciprocal %107 {approx = true} : vector<8x1xf32> -> vector<8x1xf32>
    %109 = vector.broadcast %108 : vector<8x1xf32> to vector<8x8xf32>
    %110 = arith.mulf %105, %109 : vector<8x8xf32>
    %111 = arith.truncf %110 : vector<8x8xf32> to vector<8x8xbf16>
    %cst_42 = arith.constant dense<0.000000e+00> : vector<8x8xf32>
    %112 = tpu.matmul %111, %95, %cst_42 {dimension_numbers = #tpu.dot_dimension_numbers<[1], [0], [0], [1], [0, 0, 1, 1], [], []>} : vector<8x8xbf16>, vector<8x8xbf16>, vector<8x8xf32> -> vector<8x8xf32>
    %113 = arith.truncf %112 : vector<8x8xf32> to vector<8x8xbf16>
    %c3 = arith.constant 3 : index
    %c0_43 = arith.constant 0 : index
    %c0_44 = arith.constant 0 : index
    %114 = vector.load %arg5[%c3, %c0_43, %c0_44] : memref<4x8x32xbf16, #tpu.memory_space<vmem>>, vector<1x8x32xbf16>
    %115 = vector.shape_cast %114 : vector<1x8x32xbf16> to vector<8x32xbf16>
    %cst_45 = arith.constant dense<0.000000e+00> : vector<8x32xf32>
    %116 = tpu.matmul %113, %115, %cst_45 {dimension_numbers = #tpu.dot_dimension_numbers<[1], [0], [0], [1], [0, 0, 1, 1], [], []>} : vector<8x8xbf16>, vector<8x32xbf16>, vector<8x32xf32> -> vector<8x32xf32>
    %117 = arith.addf %92, %116 : vector<8x32xf32>
    %c0_46 = arith.constant 0 : index
    %c0_47 = arith.constant 0 : index
    %118 = vector.load %arg7[%c0_46, %c0_47] : memref<1x32xf32, #tpu.memory_space<vmem>>, vector<1x32xf32>
    %c0_48 = arith.constant 0 : index
    %c0_49 = arith.constant 0 : index
    %119 = vector.load %arg8[%c0_48, %c0_49] : memref<1x32xf32, #tpu.memory_space<vmem>>, vector<1x32xf32>
    %cst_50 = arith.constant dense<0.000000e+00> : vector<8xf32>
    %120 = vector.multi_reduction <add>, %117, %cst_50 [1] : vector<8x32xf32> to vector<8xf32>
    %121 = vector.shape_cast %120 : vector<8xf32> to vector<8x1xf32>
    %cst_51 = arith.constant 3.200000e+01 : f32
    %122 = vector.broadcast %cst_51 : f32 to vector<8x1xf32>
    %123 = arith.divf %121, %122 : vector<8x1xf32>
    %124 = vector.broadcast %123 : vector<8x1xf32> to vector<8x32xf32>
    %125 = arith.subf %117, %124 : vector<8x32xf32>
    %126 = arith.mulf %125, %125 : vector<8x32xf32>
    %cst_52 = arith.constant dense<0.000000e+00> : vector<8xf32>
    %127 = vector.multi_reduction <add>, %126, %cst_52 [1] : vector<8x32xf32> to vector<8xf32>
    %128 = vector.shape_cast %127 : vector<8xf32> to vector<8x1xf32>
    %cst_53 = arith.constant 3.200000e+01 : f32
    %129 = vector.broadcast %cst_53 : f32 to vector<8x1xf32>
    %130 = arith.divf %128, %129 : vector<8x1xf32>
    %131 = vector.broadcast %123 : vector<8x1xf32> to vector<8x32xf32>
    %132 = arith.subf %117, %131 : vector<8x32xf32>
    %cst_54 = arith.constant 9.99999974E-6 : f32
    %133 = vector.broadcast %cst_54 : f32 to vector<8x1xf32>
    %134 = arith.addf %130, %133 : vector<8x1xf32>
    %135 = math.rsqrt %134 : vector<8x1xf32>
    %136 = vector.broadcast %135 : vector<8x1xf32> to vector<8x32xf32>
    %137 = arith.mulf %132, %136 : vector<8x32xf32>
    %138 = vector.broadcast %118 : vector<1x32xf32> to vector<8x32xf32>
    %139 = arith.mulf %137, %138 : vector<8x32xf32>
    %140 = vector.broadcast %119 : vector<1x32xf32> to vector<8x32xf32>
    %141 = arith.addf %139, %140 : vector<8x32xf32>
    %142 = arith.truncf %141 : vector<8x32xf32> to vector<8x32xbf16>
    %c0_55 = arith.constant 0 : index
    %c0_56 = arith.constant 0 : index
    %143 = vector.load %arg9[%c0_55, %c0_56] : memref<32x64xbf16, #tpu.memory_space<vmem>>, vector<32x64xbf16>
    %cst_57 = arith.constant dense<0.000000e+00> : vector<8x64xf32>
    %144 = tpu.matmul %142, %143, %cst_57 {dimension_numbers = #tpu.dot_dimension_numbers<[1], [0], [0], [1], [0, 0, 1, 1], [], []>} : vector<8x32xbf16>, vector<32x64xbf16>, vector<8x64xf32> -> vector<8x64xf32>
    %c0_58 = arith.constant 0 : index
    %c0_59 = arith.constant 0 : index
    %145 = vector.load %arg10[%c0_58, %c0_59] : memref<1x64xf32, #tpu.memory_space<vmem>>, vector<1x64xf32>
    %146 = vector.broadcast %145 : vector<1x64xf32> to vector<8x64xf32>
    %147 = arith.addf %144, %146 : vector<8x64xf32>
    %cst_60 = arith.constant 5.000000e-01 : f32
    %148 = vector.broadcast %cst_60 : f32 to vector<8x64xf32>
    %149 = arith.mulf %148, %147 : vector<8x64xf32>
    %cst_61 = arith.constant 4.471500e-02 : f32
    %150 = vector.broadcast %cst_61 : f32 to vector<8x64xf32>
    %151 = arith.mulf %150, %147 : vector<8x64xf32>
    %152 = arith.mulf %151, %147 : vector<8x64xf32>
    %153 = arith.mulf %152, %147 : vector<8x64xf32>
    %154 = arith.addf %147, %153 : vector<8x64xf32>
    %cst_62 = arith.constant 0.797884583 : f32
    %155 = vector.broadcast %cst_62 : f32 to vector<8x64xf32>
    %156 = arith.mulf %155, %154 : vector<8x64xf32>
    %157 = math.tanh %156 : vector<8x64xf32>
    %cst_63 = arith.constant 1.000000e+00 : f32
    %158 = vector.broadcast %cst_63 : f32 to vector<8x64xf32>
    %159 = arith.addf %158, %157 : vector<8x64xf32>
    %160 = arith.mulf %149, %159 : vector<8x64xf32>
    %161 = arith.truncf %160 : vector<8x64xf32> to vector<8x64xbf16>
    %c0_64 = arith.constant 0 : index
    %c0_65 = arith.constant 0 : index
    %162 = vector.load %arg11[%c0_64, %c0_65] : memref<64x32xbf16, #tpu.memory_space<vmem>>, vector<64x32xbf16>
    %cst_66 = arith.constant dense<0.000000e+00> : vector<8x32xf32>
    %163 = tpu.matmul %161, %162, %cst_66 {dimension_numbers = #tpu.dot_dimension_numbers<[1], [0], [0], [1], [0, 0, 1, 1], [], []>} : vector<8x64xbf16>, vector<64x32xbf16>, vector<8x32xf32> -> vector<8x32xf32>
    %c0_67 = arith.constant 0 : index
    %c0_68 = arith.constant 0 : index
    %164 = vector.load %arg12[%c0_67, %c0_68] : memref<1x32xf32, #tpu.memory_space<vmem>>, vector<1x32xf32>
    %165 = vector.broadcast %164 : vector<1x32xf32> to vector<8x32xf32>
    %166 = arith.addf %163, %165 : vector<8x32xf32>
    %167 = arith.addf %166, %141 : vector<8x32xf32>
    %c0_69 = arith.constant 0 : index
    %c0_70 = arith.constant 0 : index
    %168 = vector.load %arg13[%c0_69, %c0_70] : memref<1x32xf32, #tpu.memory_space<vmem>>, vector<1x32xf32>
    %c0_71 = arith.constant 0 : index
    %c0_72 = arith.constant 0 : index
    %169 = vector.load %arg14[%c0_71, %c0_72] : memref<1x32xf32, #tpu.memory_space<vmem>>, vector<1x32xf32>
    %cst_73 = arith.constant dense<0.000000e+00> : vector<8xf32>
    %170 = vector.multi_reduction <add>, %167, %cst_73 [1] : vector<8x32xf32> to vector<8xf32>
    %171 = vector.shape_cast %170 : vector<8xf32> to vector<8x1xf32>
    %cst_74 = arith.constant 3.200000e+01 : f32
    %172 = vector.broadcast %cst_74 : f32 to vector<8x1xf32>
    %173 = arith.divf %171, %172 : vector<8x1xf32>
    %174 = vector.broadcast %173 : vector<8x1xf32> to vector<8x32xf32>
    %175 = arith.subf %167, %174 : vector<8x32xf32>
    %176 = arith.mulf %175, %175 : vector<8x32xf32>
    %cst_75 = arith.constant dense<0.000000e+00> : vector<8xf32>
    %177 = vector.multi_reduction <add>, %176, %cst_75 [1] : vector<8x32xf32> to vector<8xf32>
    %178 = vector.shape_cast %177 : vector<8xf32> to vector<8x1xf32>
    %cst_76 = arith.constant 3.200000e+01 : f32
    %179 = vector.broadcast %cst_76 : f32 to vector<8x1xf32>
    %180 = arith.divf %178, %179 : vector<8x1xf32>
    %181 = vector.broadcast %173 : vector<8x1xf32> to vector<8x32xf32>
    %182 = arith.subf %167, %181 : vector<8x32xf32>
    %cst_77 = arith.constant 9.99999974E-6 : f32
    %183 = vector.broadcast %cst_77 : f32 to vector<8x1xf32>
    %184 = arith.addf %180, %183 : vector<8x1xf32>
    %185 = math.rsqrt %184 : vector<8x1xf32>
    %186 = vector.broadcast %185 : vector<8x1xf32> to vector<8x32xf32>
    %187 = arith.mulf %182, %186 : vector<8x32xf32>
    %188 = vector.broadcast %168 : vector<1x32xf32> to vector<8x32xf32>
    %189 = arith.mulf %187, %188 : vector<8x32xf32>
    %190 = vector.broadcast %169 : vector<1x32xf32> to vector<8x32xf32>
    %191 = arith.addf %189, %190 : vector<8x32xf32>
    %c0_78 = arith.constant 0 : index
    %c0_79 = arith.constant 0 : index
    %c0_80 = arith.constant 0 : index
    %192 = vector.load %arg15[%c0_78, %c0_79, %c0_80] : memref<1x8x32xf32, #tpu.memory_space<vmem>>, vector<1x8x32xf32>
    %193 = vector.shape_cast %192 : vector<1x8x32xf32> to vector<8x32xf32>
    %194 = vector.shape_cast %191 : vector<8x32xf32> to vector<1x8x32xf32>
    tpu.vector_store %arg15[%c0_78, %c0_79, %c0_80], %194 {strides = array<i32>} : memref<1x8x32xf32, #tpu.memory_space<vmem>>, vector<1x8x32xf32>,
    return
  }
  func.func @transform_0(%arg0: i32) -> (i32, i32, i32) {
    %c0_i32 = arith.constant 0 : i32
    %c0_i32_0 = arith.constant 0 : i32
    %c0_i32_1 = arith.constant 0 : i32
    return %arg0, %c0_i32, %c0_i32_0 : i32, i32, i32
  }
  func.func @transform_1(%arg0: i32) -> (i32, i32, i32) {
    %c0_i32 = arith.constant 0 : i32
    %c0_i32_0 = arith.constant 0 : i32
    %c0_i32_1 = arith.constant 0 : i32
    return %arg0, %c0_i32, %c0_i32_0 : i32, i32, i32
  }
  func.func @transform_2(%arg0: i32) -> (i32, i32) {
    %c0_i32 = arith.constant 0 : i32
    %c0_i32_0 = arith.constant 0 : i32
    %c0_i32_1 = arith.constant 0 : i32
    return %c0_i32, %c0_i32_0 : i32, i32
  }
  func.func @transform_3(%arg0: i32) -> (i32, i32) {
    %c0_i32 = arith.constant 0 : i32
    %c0_i32_0 = arith.constant 0 : i32
    %c0_i32_1 = arith.constant 0 : i32
    return %c0_i32, %c0_i32_0 : i32, i32
  }
  func.func @transform_4(%arg0: i32) -> (i32, i32, i32) {
    %c0_i32 = arith.constant 0 : i32
    %c0_i32_0 = arith.constant 0 : i32
    %c0_i32_1 = arith.constant 0 : i32
    %c0_i32_2 = arith.constant 0 : i32
    return %c0_i32, %c0_i32_0, %c0_i32_1 : i32, i32, i32
  }
  func.func @transform_5(%arg0: i32) -> (i32, i32) {
    %c0_i32 = arith.constant 0 : i32
    %c0_i32_0 = arith.constant 0 : i32
    %c0_i32_1 = arith.constant 0 : i32
    return %c0_i32, %c0_i32_0 : i32, i32
  }
  func.func @transform_6(%arg0: i32) -> (i32, i32) {
    %c0_i32 = arith.constant 0 : i32
    %c0_i32_0 = arith.constant 0 : i32
    %c0_i32_1 = arith.constant 0 : i32
    return %c0_i32, %c0_i32_0 : i32, i32
  }
  func.func @transform_7(%arg0: i32) -> (i32, i32) {
    %c0_i32 = arith.constant 0 : i32
    %c0_i32_0 = arith.constant 0 : i32
    %c0_i32_1 = arith.constant 0 : i32
    return %c0_i32, %c0_i32_0 : i32, i32
  }
  func.func @transform_8(%arg0: i32) -> (i32, i32) {
    %c0_i32 = arith.constant 0 : i32
    %c0_i32_0 = arith.constant 0 : i32
    %c0_i32_1 = arith.constant 0 : i32
    return %c0_i32, %c0_i32_0 : i32, i32
  }
  func.func @transform_9(%arg0: i32) -> (i32, i32) {
    %c0_i32 = arith.constant 0 : i32
    %c0_i32_0 = arith.constant 0 : i32
    %c0_i32_1 = arith.constant 0 : i32
    return %c0_i32, %c0_i32_0 : i32, i32
  }
  func.func @transform_10(%arg0: i32) -> (i32, i32) {
    %c0_i32 = arith.constant 0 : i32
    %c0_i32_0 = arith.constant 0 : i32
    %c0_i32_1 = arith.constant 0 : i32
    return %c0_i32, %c0_i32_0 : i32, i32
  }
  func.func @transform_11(%arg0: i32) -> (i32, i32) {
    %c0_i32 = arith.constant 0 : i32
    %c0_i32_0 = arith.constant 0 : i32
    %c0_i32_1 = arith.constant 0 : i32
    return %c0_i32, %c0_i32_0 : i32, i32
  }
  func.func @transform_12(%arg0: i32) -> (i32, i32) {
    %c0_i32 = arith.constant 0 : i32
    %c0_i32_0 = arith.constant 0 : i32
    %c0_i32_1 = arith.constant 0 : i32
    return %c0_i32, %c0_i32_0 : i32, i32
  }
  func.func @transform_13(%arg0: i32) -> (i32, i32) {
    %c0_i32 = arith.constant 0 : i32
    %c0_i32_0 = arith.constant 0 : i32
    %c0_i32_1 = arith.constant 0 : i32
    return %c0_i32, %c0_i32_0 : i32, i32
  }
  func.func @transform_14(%arg0: i32) -> (i32, i32, i32) {
    %c0_i32 = arith.constant 0 : i32
    %c0_i32_0 = arith.constant 0 : i32
    %c0_i32_1 = arith.constant 0 : i32
    return %arg0, %c0_i32, %c0_i32_0 : i32, i32, i32
  }
}

</mosaic_0001>

<llo_original>
// kernel: roberta_for_sequence_classification.4
$region0: #{roberta_for_sequence_classification.4}
  #allocation0 [shape = 'u32[]', space=smem, size = 0x4, offset = 0x4, fixed_abs, tag = 'smem constant byte address 0x4 - core index']
  #allocation1 [shape = 'u32[144,128]{1,0:T(1,128)}', space=vmem, size = 0x12000, scoped, tag = 'internal scratch']
  %s0 = inlined_call_operand.vmem [shape: f32[16,32], index: 0, kind: input, shape index: {}]
  %s1 = inlined_call_operand.vmem [shape: f32[1,32], index: 1, kind: input, shape index: {}]
  %s2 = inlined_call_operand.vmem [shape: f32[1,32], index: 2, kind: input, shape index: {}]
  %s3 = inlined_call_operand.vmem [shape: f32[16,32], index: 3, kind: output, shape index: {}]
  %s4 = sld [smem:[#allocation0]]
  $region45: #{roberta_for_sequence_classification.4} parent=0
    _
  %s6 = ssub.s32 1, %s4
  %s7 = scalar_select 0, %s6, %s4
  loop: start=0, step=1, limit=4
  $region2: #{roberta_for_sequence_classification.4} parent=0 // loop_pre_header
    _
  $region3: #{roberta_for_sequence_classification.4} parent=0 // loop_header
    %s9 = sphi 0, %s13
    %p10 = scmp.ge.s32.totalorder %s9, 4
    %s19 = sphi 0, %s21
    %s22 = sphi 0, %s19
    %s23 = sphi 0, %s22
    %s39 = sphi 0, %s23
    %s43 = sphi 0, %s43
    %s45 = sphi 0, %s43
    %s46 = sphi 0, %s45
    %s60 = sphi 0, %s46
    %s64 = sphi 0, %s64
    %s66 = sphi 0, %s64
    %s67 = sphi 0, %s66
    %s81 = sphi 0, %s67
    %s87 = sphi 0, %s89
    %s90 = sphi 0, %s87
    %s91 = sphi 0, %s90
    %s107 = sphi 0, %s91
  $region4: #{roberta_for_sequence_classification.4} parent=0 // loop_header_branch
    %12 = sbr.rel (%p10) target = $region8
  $region5: #{roberta_for_sequence_classification.4} parent=0 // loop_body
    %s14 = ssub.s32 %s9, 1
    %s15 = ssub.s32 %s9, 2
    %s16 = sadd.s32 %s9, 1
    %s17 = ssub.s32 %s9, %s16
    %p18 = scmp.eq.s32.totalorder %s17, 0
    %s20 = sadd.s32 %s19, 1
    %s21 = scalar_select %p18, %s19, %s20
    %p24 = pneg %p18
    %p25 = scmp.eq.s32.totalorder %s9, 1
    %p26 = por %p24, %p25
    %p27 = scmp.ne.s32.totalorder %s19, %s22
    %p28 = scmp.eq.s32.totalorder %s9, 0
    %p29 = por %p27, %p28
    %p30 = scmp.ne.s32.totalorder %s19, %s22
    %p31 = scmp.eq.s32.totalorder %s14, 1
    %p32 = por %p30, %p31
    %p33 = scmp.ne.s32.totalorder %s22, %s23
    %p34 = scmp.eq.s32.totalorder %s14, 0
    %p35 = por %p33, %p34
    %p36 = scmp.ne.s32.totalorder %s22, %s23
    %p37 = scmp.eq.s32.totalorder %s15, 1
    %p38 = por %p36, %p37
    %p40 = scmp.ne.s32.totalorder %s23, %s39
    %p41 = scmp.eq.s32.totalorder %s15, 0
    %p42 = por %p40, %p41
    %s44 = sadd.s32 %s43, 1
    %p47 = scmp.eq.s32.totalorder %s9, 1
    %p48 = scmp.ne.s32.totalorder %s43, %s45
    %p49 = scmp.eq.s32.totalorder %s9, 0
    %p50 = por %p48, %p49
    %p51 = scmp.ne.s32.totalorder %s43, %s45
    %p52 = scmp.eq.s32.totalorder %s14, 1
    %p53 = por %p51, %p52
    %p54 = scmp.ne.s32.totalorder %s45, %s46
    %p55 = scmp.eq.s32.totalorder %s14, 0
    %p56 = por %p54, %p55
    %p57 = scmp.ne.s32.totalorder %s45, %s46
    %p58 = scmp.eq.s32.totalorder %s15, 1
    %p59 = por %p57, %p58
    %p61 = scmp.ne.s32.totalorder %s46, %s60
    %p62 = scmp.eq.s32.totalorder %s15, 0
    %p63 = por %p61, %p62
    %s65 = sadd.s32 %s64, 1
    %p68 = scmp.eq.s32.totalorder %s9, 1
    %p69 = scmp.ne.s32.totalorder %s64, %s66
    %p70 = scmp.eq.s32.totalorder %s9, 0
    %p71 = por %p69, %p70
    %p72 = scmp.ne.s32.totalorder %s64, %s66
    %p73 = scmp.eq.s32.totalorder %s14, 1
    %p74 = por %p72, %p73
    %p75 = scmp.ne.s32.totalorder %s66, %s67
    %p76 = scmp.eq.s32.totalorder %s14, 0
    %p77 = por %p75, %p76
    %p78 = scmp.ne.s32.totalorder %s66, %s67
    %p79 = scmp.eq.s32.totalorder %s15, 1
    %p80 = por %p78, %p79
    %p82 = scmp.ne.s32.totalorder %s67, %s81
    %p83 = scmp.eq.s32.totalorder %s15, 0
    %p84 = por %p82, %p83
    %s85 = ssub.s32 %s9, %s16
    %p86 = scmp.eq.s32.totalorder %s85, 0
    %s88 = sadd.s32 %s87, 1
    %s89 = scalar_select %p86, %s87, %s88
    %p92 = pneg %p86
    %p93 = scmp.eq.s32.totalorder %s9, 1
    %p94 = por %p92, %p93
    %p95 = scmp.ne.s32.totalorder %s87, %s90
    %p96 = scmp.eq.s32.totalorder %s9, 0
    %p97 = por %p95, %p96
    %p98 = scmp.ne.s32.totalorder %s87, %s90
    %p99 = scmp.eq.s32.totalorder %s14, 1
    %p100 = por %p98, %p99
    %p101 = scmp.ne.s32.totalorder %s90, %s91
    %p102 = scmp.eq.s32.totalorder %s14, 0
    %p103 = por %p101, %p102
    %p104 = scmp.ne.s32.totalorder %s90, %s91
    %p105 = scmp.eq.s32.totalorder %s15, 1
    %p106 = por %p104, %p105
    %p108 = scmp.ne.s32.totalorder %s91, %s107
    %p109 = scmp.eq.s32.totalorder %s15, 0
    %p110 = por %p108, %p109
    %p111 = scmp.le.s32.totalorder 1, %s9
    %p112 = scmp.lt.s32.totalorder %s9, 3
    %p113 = pnand %p111, %p112
    %p114 = pneg %p113
    // Predicated region
    $region9: #{roberta_for_sequence_classification.4} parent=5 // pred_check
      _
    $region10: #{roberta_for_sequence_classification.4} parent=5 // pred_check_branch
      %116 = sbr.rel (%p113) target = $region12
    $region11: #{roberta_for_sequence_classification.4} parent=5 // pred_region
      %s117 = ssub.s32 %s9, 1
      // Predicated region
      $region13: #{roberta_for_sequence_classification.4} parent=11 // pred_check
        %p118 = pneg %p56
      $region14: #{roberta_for_sequence_classification.4} parent=11 // pred_check_branch
        %120 = sbr.rel (%p118) target = $region16
      $region15: #{roberta_for_sequence_classification.4} parent=11 // pred_region
        _
      $region16: #{roberta_for_sequence_classification.4} parent=11 // pred_fallthru
        _
      // Predicated region
      $region17: #{roberta_for_sequence_classification.4} parent=11 // pred_check
        %p121 = pneg %p77
      $region18: #{roberta_for_sequence_classification.4} parent=11 // pred_check_branch
        %123 = sbr.rel (%p121) target = $region20
      $region19: #{roberta_for_sequence_classification.4} parent=11 // pred_region
        _
      $region20: #{roberta_for_sequence_classification.4} parent=11 // pred_fallthru
        _
    $region12: #{roberta_for_sequence_classification.4} parent=5 // pred_fallthru
      _
    %p124 = scmp.lt.s32.totalorder %s9, 2
    // Predicated region
    $region21: #{roberta_for_sequence_classification.4} parent=5 // pred_check
      %p125 = pneg %p124
    $region22: #{roberta_for_sequence_classification.4} parent=5 // pred_check_branch
      %127 = sbr.rel (%p125) target = $region24
    $region23: #{roberta_for_sequence_classification.4} parent=5 // pred_region
      // Predicated region
      $region25: #{roberta_for_sequence_classification.4} parent=23 // pred_check
        %p128 = pneg %p29
      $region26: #{roberta_for_sequence_classification.4} parent=23 // pred_check_branch
        %130 = sbr.rel (%p128) target = $region28
      $region27: #{roberta_for_sequence_classification.4} parent=23 // pred_region
        %p131 = scmp.lt.s32.totalorder %s9, 1
        %s132 = scalar_select %p131, %s9, 1
        %s133 = smul.addr %s132, 8
        %s134 = scalar_lea.vmem %s0, %s133
      $region28: #{roberta_for_sequence_classification.4} parent=23 // pred_fallthru
        _
    $region24: #{roberta_for_sequence_classification.4} parent=5 // pred_fallthru
      _
    %p135 = scmp.le.s32.totalorder 1, %s9
    %p136 = scmp.lt.s32.totalorder %s9, 3
    %p137 = pnand %p135, %p136
    %p138 = pneg %p137
    // Predicated region
    $region29: #{roberta_for_sequence_classification.4} parent=5 // pred_check
      _
    $region30: #{roberta_for_sequence_classification.4} parent=5 // pred_check_branch
      %140 = sbr.rel (%p137) target = $region32
    $region31: #{roberta_for_sequence_classification.4} parent=5 // pred_region
      %s141 = ssub.s32 %s9, 1
      %p142 = scmp.lt.s32.totalorder %s14, 1
      %s143 = scalar_select %p142, %s14, 1
      %s144 = smul.addr %s143, 8
      %s145 = scalar_lea.vmem %s0, %s144
      %p146 = pneg %p35
      %p147 = pneg %p32
      %p148 = pneg %p56
      %p149 = pneg %p53
      %p150 = pneg %p77
      %p151 = pneg %p74
      %p152 = pneg %p103
      %p153 = pneg %p100
      %p154 = scmp.lt.s32.totalorder %s14, 1
      %s155 = scalar_select %p154, %s14, 1
      %s156 = smul.addr %s155, 8
      %s157 = scalar_lea.vmem %s3, %s156
      %p158 = scmp.lt.s32.totalorder %s14, 1
      %s159 = scalar_select %p158, %s14, 1
      %s160 = smul.addr %s159, 8
      %s161 = scalar_lea.vmem %s0, %s160
      %p162 = scmp.lt.s32.totalorder %s14, 1
      %s163 = scalar_select %p162, %s14, 1
      %s164 = smul.addr %s163, 8
      %s165 = scalar_lea.vmem %s3, %s164
      %v166 = vld [vmem:[%s161] sm:$0xff]
      %v167 = vld [vmem:[%s1] sm:$0x1]
      %v168 = vld [vmem:[%s2] sm:$0x1]
      %vm169 = vcmask 261120
      %v170 = vsel %vm169, %v166, 0.0
      %171 = vadd.xlane.f32.xlu0 %v170
      %v172 = vpop.xlane.xlu0 %171
      %v173 = vrcp.pop 32.0
      %v174 = vmul.f32 %v172, %v173
      %v175 = vsub.f32 %v166, %v174
      %v176 = vmul.f32 %v175, %v175
      %v177 = vsel %vm169, %v176, 0.0
      %178 = vadd.xlane.f32.xlu0 %v177
      %v179 = vpop.xlane.xlu0 %178
      %v180 = vmul.f32 %v179, %v173
      %v181 = vadd.f32 %v180, 1e-05
      %v182 = vrsqrt.pop %v181
      %v183 = vmul.f32 %v175, %v182
      %v185 = vlaneseq
      %v186 = vshrl.u32 %v185, 7
      %v187 = vsub.s32 0, %v186
      %v188 = vrot.slane %v167, %v187
      %v190 = vmul.f32 %v183, %v188
      %v192 = vlaneseq
      %v193 = vshrl.u32 %v192, 7
      %v194 = vsub.s32 0, %v193
      %v195 = vrot.slane %v168, %v194
      %v197 = vadd.f32 %v190, %v195
      %198 = vst.msk [vmem:[%s165] sm:$0xff] %vm169, %v197
      %p199 = scmp.lt.s32.totalorder %s14, 1
      %s200 = scalar_select %p199, %s14, 1
      %s201 = smul.addr %s200, 8
      %s202 = scalar_lea.vmem %s3, %s201
      // Predicated region
      $region33: #{roberta_for_sequence_classification.4} parent=31 // pred_check
        %p203 = pneg %p100
      $region34: #{roberta_for_sequence_classification.4} parent=31 // pred_check_branch
        %205 = sbr.rel (%p203) target = $region36
      $region35: #{roberta_for_sequence_classification.4} parent=31 // pred_region
        _
      $region36: #{roberta_for_sequence_classification.4} parent=31 // pred_fallthru
        _
    $region32: #{roberta_for_sequence_classification.4} parent=5 // pred_fallthru
      _
    %p206 = scmp.le.s32.totalorder 2, %s9
    // Predicated region
    $region37: #{roberta_for_sequence_classification.4} parent=5 // pred_check
      %p207 = pneg %p206
    $region38: #{roberta_for_sequence_classification.4} parent=5 // pred_check_branch
      %209 = sbr.rel (%p207) target = $region40
    $region39: #{roberta_for_sequence_classification.4} parent=5 // pred_region
      %s210 = ssub.s32 %s9, 2
      // Predicated region
      $region41: #{roberta_for_sequence_classification.4} parent=39 // pred_check
        %p211 = pneg %p106
      $region42: #{roberta_for_sequence_classification.4} parent=39 // pred_check_branch
        %213 = sbr.rel (%p211) target = $region44
      $region43: #{roberta_for_sequence_classification.4} parent=39 // pred_region
        %p214 = scmp.lt.s32.totalorder %s15, 1
        %s215 = scalar_select %p214, %s15, 1
        %s216 = smul.addr %s215, 8
        %s217 = scalar_lea.vmem %s3, %s216
      $region44: #{roberta_for_sequence_classification.4} parent=39 // pred_fallthru
        _
    $region40: #{roberta_for_sequence_classification.4} parent=5 // pred_fallthru
      _
  $region6: #{roberta_for_sequence_classification.4} parent=0 // loop_footer
    %s13 = sadd.s32 1, %s9
  $region7: #{roberta_for_sequence_classification.4} parent=0 // loop_footer_branch
    %8 = sbr.rel target = $region3
  $region8: #{roberta_for_sequence_classification.4} parent=0 // loop_exit
    _

// kernel: roberta_for_sequence_classification.7
$region0: #{roberta_for_sequence_classification.7}
  #allocation0 [shape = 'u32[]', space=smem, size = 0x4, offset = 0x4, fixed_abs, tag = 'smem constant byte address 0x4 - core index']
  #allocation1 [shape = 'u32[144,128]{1,0:T(1,128)}', space=vmem, size = 0x12000, scoped, tag = 'internal scratch']
  %s0 = inlined_call_operand.vmem [shape: f32[2,32], index: 0, kind: input, shape index: {}]
  %s1 = inlined_call_operand.vmem [shape: bf16[32,32], index: 1, kind: input, shape index: {}]
  %s2 = inlined_call_operand.vmem [shape: f32[1,32], index: 2, kind: input, shape index: {}]
  %s3 = inlined_call_operand.vmem [shape: bf16[32,32], index: 3, kind: input, shape index: {}]
  %s4 = inlined_call_operand.vmem [shape: f32[1,32], index: 4, kind: input, shape index: {}]
  %s5 = inlined_call_operand.vmem [shape: bf16[32,128], index: 5, kind: input, shape index: {}]
  %s6 = inlined_call_operand.vmem [shape: f32[1,128], index: 6, kind: input, shape index: {}]
  %s7 = inlined_call_operand.hbm [shape: f32[2,128], index: 7, kind: output, shape index: {}]
  %s8 = sld [smem:[#allocation0]]
  $region38: #{roberta_for_sequence_classification.7} parent=0
    _
  %s10 = ssub.s32 1, %s8
  %s11 = scalar_select 0, %s10, %s8
  $region1: #{roberta_for_sequence_classification.7} parent=0
    #allocation2 [shape = 'u8[1024]{0}', space=vmem, size = 0x400, scoped, tag = 'output window, operand 0, single buffered']
    #allocation3 [shape = 's32[1]{0}', space=sflag, size = 0x4, scoped, tag = 'scoped memory for roberta_for_sequence_classification.7']
    %12 = vsyncpa [#allocation3], 0
    // Predicated region
    $region2: #{roberta_for_sequence_classification.7} parent=1 // pred_check
      _
    $region3: #{roberta_for_sequence_classification.7} parent=1 // pred_check_branch
      %14 = sbr.rel (0) target = $region5
    $region4: #{roberta_for_sequence_classification.7} parent=1 // pred_region
      _
    $region5: #{roberta_for_sequence_classification.7} parent=1 // pred_fallthru
      _
    // Predicated region
    $region6: #{roberta_for_sequence_classification.7} parent=1 // pred_check
      _
    $region7: #{roberta_for_sequence_classification.7} parent=1 // pred_check_branch
      %16 = sbr.rel (0) target = $region9
    $region8: #{roberta_for_sequence_classification.7} parent=1 // pred_region
      _
    $region9: #{roberta_for_sequence_classification.7} parent=1 // pred_fallthru
      _
    // Predicated region
    $region10: #{roberta_for_sequence_classification.7} parent=1 // pred_check
      _
    $region11: #{roberta_for_sequence_classification.7} parent=1 // pred_check_branch
      %18 = sbr.rel (0) target = $region13
    $region12: #{roberta_for_sequence_classification.7} parent=1 // pred_region
      _
    $region13: #{roberta_for_sequence_classification.7} parent=1 // pred_fallthru
      _
    // Predicated region
    $region14: #{roberta_for_sequence_classification.7} parent=1 // pred_check
      _
    $region15: #{roberta_for_sequence_classification.7} parent=1 // pred_check_branch
      %20 = sbr.rel (0) target = $region17
    $region16: #{roberta_for_sequence_classification.7} parent=1 // pred_region
      _
    $region17: #{roberta_for_sequence_classification.7} parent=1 // pred_fallthru
      _
    // Predicated region
    $region18: #{roberta_for_sequence_classification.7} parent=1 // pred_check
      _
    $region19: #{roberta_for_sequence_classification.7} parent=1 // pred_check_branch
      %22 = sbr.rel (0) target = $region21
    $region20: #{roberta_for_sequence_classification.7} parent=1 // pred_region
      _
    $region21: #{roberta_for_sequence_classification.7} parent=1 // pred_fallthru
      _
    // Predicated region
    $region22: #{roberta_for_sequence_classification.7} parent=1 // pred_check
      _
    $region23: #{roberta_for_sequence_classification.7} parent=1 // pred_check_branch
      %24 = sbr.rel (0) target = $region25
    $region24: #{roberta_for_sequence_classification.7} parent=1 // pred_region
      _
    $region25: #{roberta_for_sequence_classification.7} parent=1 // pred_fallthru
      _
    // Predicated region
    $region26: #{roberta_for_sequence_classification.7} parent=1 // pred_check
      _
    $region27: #{roberta_for_sequence_classification.7} parent=1 // pred_check_branch
      %26 = sbr.rel (0) target = $region29
    $region28: #{roberta_for_sequence_classification.7} parent=1 // pred_region
      _
    $region29: #{roberta_for_sequence_classification.7} parent=1 // pred_fallthru
      _
    %v28 = vld [vmem:[%s0] sm:$0x3]
    %v29 = vpack.c.bf16 %v28, %v28
    %v30 = vld [vmem:[%s1] sm:$0xf]
    %v31 = vld [vmem:[%s1 + $0x4] sm:$0xf]
    %v32 = vld [vmem:[%s1 + $0x8] sm:$0xf]
    %v33 = vld [vmem:[%s1 + $0xc] sm:$0xf]
    %v34 = vld [vmem:[%s2] sm:$0x1]
    %v36 = vlaneseq
    %v37 = vshrl.u32 %v36, 7
    %v38 = vsub.s32 0, %v37
    %v39 = vrot.slane %v34, %v38
    %v45 = vunpack.c.l.b16 %v30
    %v46 = vunpack.c.l.b16 %v31
    %v47 = vunpack.c.l.b16 %v32
    %v48 = vunpack.c.l.b16 %v33
    %v49 = vpack.c.b16 %v46, %v45
    %v50 = vpack.c.b16 %v48, %v47
    %vm53 = vcmask 261120
    %v55 = vsel %vm53, %v29, 0
    %57 = vmatprep.subr.bf16.mxu0 0
    %58 = vmatpush1.bf16.msra.mxu0 %v49
    %59 = vmatprep.subr.bf16.mxu0 0
    %60 = vmatpush1.bf16.msra.mxu0 %v50
    %61 = vmatprep.subr.bf16.mxu0 0
    %62 = vmatpush1.bf16.msra.mxu0 0
    %63 = vmatprep.subr.bf16.mxu0 0
    %64 = vmatpush1.bf16.msra.mxu0 0
    %65 = vmatprep.subr.bf16.mxu0 0
    %66 = vmatpush1.bf16.msra.mxu0 0
    %67 = vmatprep.subr.bf16.mxu0 0
    %68 = vmatpush1.bf16.msra.mxu0 0
    %69 = vmatprep.subr.bf16.mxu0 0
    %70 = vmatpush1.bf16.msra.mxu0 0
    %71 = vmatprep.subr.bf16.mxu0 0
    %72 = vmatpush1.bf16.msra.mxu0 0
    %73 = vmatprep.subr.bf16.mxu0 0
    %74 = vmatpush1.bf16.msra.mxu0 0
    %75 = vmatprep.subr.bf16.mxu0 0
    %76 = vmatpush1.bf16.msra.mxu0 0
    %77 = vmatprep.subr.bf16.mxu0 0
    %78 = vmatpush1.bf16.msra.mxu0 0
    %79 = vmatprep.subr.bf16.mxu0 0
    %80 = vmatpush1.bf16.msra.mxu0 0
    %81 = vmatprep.subr.bf16.mxu0 0
    %82 = vmatpush1.bf16.msra.mxu0 0
    %83 = vmatprep.subr.bf16.mxu0 0
    %84 = vmatpush1.bf16.msra.mxu0 0
    %85 = vmatprep.subr.bf16.mxu0 0
    %86 = vmatpush1.bf16.msra.mxu0 0
    %87 = vmatprep.subr.bf16.mxu0 0
    %88 = vmatpush1.bf16.msra.mxu0 0
    %89 = vmatprep.mubr.bf16.mxu0 0
    %90 = vmatmul.mubr.bf16.gmra.mrb[0].mxu0 %v55
    %v91 = vpop.f32.mrb[0].mxu0
    %v92 = vadd.f32 %v39, %v91
    %v93 = vpop.f32.mrb[0].mxu0
    %v94 = vpop.f32.mrb[0].mxu0
    %v95 = vpop.f32.mrb[0].mxu0
    %96 = vdwg.mxu0
    %v97 = vtanh.pop %v92
    %v98 = vpack.c.bf16 %v97, %v97
    %v99 = vld [vmem:[%s3] sm:$0xf]
    %v100 = vld [vmem:[%s3 + $0x4] sm:$0xf]
    %v101 = vld [vmem:[%s3 + $0x8] sm:$0xf]
    %v102 = vld [vmem:[%s3 + $0xc] sm:$0xf]
    %v103 = vld [vmem:[%s4] sm:$0x1]
    %v105 = vlaneseq
    %v106 = vshrl.u32 %v105, 7
    %v107 = vsub.s32 0, %v106
    %v108 = vrot.slane %v103, %v107
    %v114 = vunpack.c.l.b16 %v99
    %v115 = vunpack.c.l.b16 %v100
    %v116 = vunpack.c.l.b16 %v101
    %v117 = vunpack.c.l.b16 %v102
    %v118 = vpack.c.b16 %v115, %v114
    %v119 = vpack.c.b16 %v117, %v116
    %v123 = vsel %vm53, %v98, 0
    %125 = vmatprep.subr.bf16.mxu0 0
    %126 = vmatpush1.bf16.msra.mxu0 %v118
    %127 = vmatprep.subr.bf16.mxu0 0
    %128 = vmatpush1.bf16.msra.mxu0 %v119
    %129 = vmatprep.subr.bf16.mxu0 0
    %130 = vmatpush1.bf16.msra.mxu0 0
    %131 = vmatprep.subr.bf16.mxu0 0
    %132 = vmatpush1.bf16.msra.mxu0 0
    %133 = vmatprep.subr.bf16.mxu0 0
    %134 = vmatpush1.bf16.msra.mxu0 0
    %135 = vmatprep.subr.bf16.mxu0 0
    %136 = vmatpush1.bf16.msra.mxu0 0
    %137 = vmatprep.subr.bf16.mxu0 0
    %138 = vmatpush1.bf16.msra.mxu0 0
    %139 = vmatprep.subr.bf16.mxu0 0
    %140 = vmatpush1.bf16.msra.mxu0 0
    %141 = vmatprep.subr.bf16.mxu0 0
    %142 = vmatpush1.bf16.msra.mxu0 0
    %143 = vmatprep.subr.bf16.mxu0 0
    %144 = vmatpush1.bf16.msra.mxu0 0
    %145 = vmatprep.subr.bf16.mxu0 0
    %146 = vmatpush1.bf16.msra.mxu0 0
    %147 = vmatprep.subr.bf16.mxu0 0
    %148 = vmatpush1.bf16.msra.mxu0 0
    %149 = vmatprep.subr.bf16.mxu0 0
    %150 = vmatpush1.bf16.msra.mxu0 0
    %151 = vmatprep.subr.bf16.mxu0 0
    %152 = vmatpush1.bf16.msra.mxu0 0
    %153 = vmatprep.subr.bf16.mxu0 0
    %154 = vmatpush1.bf16.msra.mxu0 0
    %155 = vmatprep.subr.bf16.mxu0 0
    %156 = vmatpush1.bf16.msra.mxu0 0
    %157 = vmatprep.mubr.bf16.mxu0 0
    %158 = vmatmul.mubr.bf16.gmra.mrb[0].mxu0 %v123
    %v159 = vpop.f32.mrb[0].mxu0
    %v160 = vadd.f32 %v108, %v159
    %v161 = vpop.f32.mrb[0].mxu0
    %v162 = vpop.f32.mrb[0].mxu0
    %v163 = vpop.f32.mrb[0].mxu0
    %164 = vdwg.mxu0
    %v165 = vtanh.pop %v160
    %v166 = vpack.c.bf16 %v165, %v165
    %v167 = vld [vmem:[%s5] sm:$0xf]
    %v168 = vld [vmem:[%s5 + $0x4] sm:$0xf]
    %v169 = vld [vmem:[%s5 + $0x8] sm:$0xf]
    %v170 = vld [vmem:[%s5 + $0xc] sm:$0xf]
    %v171 = vld [vmem:[%s6] sm:$0x1]
    %v173 = vlaneseq
    %v174 = vshrl.u32 %v173, 7
    %v175 = vsub.s32 0, %v174
    %v176 = vrot.slane %v171, %v175
    %v182 = vunpack.c.l.b16 %v167
    %v183 = vunpack.c.l.b16 %v168
    %v184 = vunpack.c.l.b16 %v169
    %v185 = vunpack.c.l.b16 %v170
    %v186 = vpack.c.b16 %v183, %v182
    %v187 = vpack.c.b16 %v185, %v184
    %v191 = vsel %vm53, %v166, 0
    %193 = vmatprep.subr.bf16.mxu0 0
    %194 = vmatpush1.bf16.msra.mxu0 %v186
    %195 = vmatprep.subr.bf16.mxu0 0
    %196 = vmatpush1.bf16.msra.mxu0 %v187
    %197 = vmatprep.subr.bf16.mxu0 0
    %198 = vmatpush1.bf16.msra.mxu0 0
    %199 = vmatprep.subr.bf16.mxu0 0
    %200 = vmatpush1.bf16.msra.mxu0 0
    %201 = vmatprep.subr.bf16.mxu0 0
    %202 = vmatpush1.bf16.msra.mxu0 0
    %203 = vmatprep.subr.bf16.mxu0 0
    %204 = vmatpush1.bf16.msra.mxu0 0
    %205 = vmatprep.subr.bf16.mxu0 0
    %206 = vmatpush1.bf16.msra.mxu0 0
    %207 = vmatprep.subr.bf16.mxu0 0
    %208 = vmatpush1.bf16.msra.mxu0 0
    %209 = vmatprep.subr.bf16.mxu0 0
    %210 = vmatpush1.bf16.msra.mxu0 0
    %211 = vmatprep.subr.bf16.mxu0 0
    %212 = vmatpush1.bf16.msra.mxu0 0
    %213 = vmatprep.subr.bf16.mxu0 0
    %214 = vmatpush1.bf16.msra.mxu0 0
    %215 = vmatprep.subr.bf16.mxu0 0
    %216 = vmatpush1.bf16.msra.mxu0 0
    %217 = vmatprep.subr.bf16.mxu0 0
    %218 = vmatpush1.bf16.msra.mxu0 0
    %219 = vmatprep.subr.bf16.mxu0 0
    %220 = vmatpush1.bf16.msra.mxu0 0
    %221 = vmatprep.subr.bf16.mxu0 0
    %222 = vmatpush1.bf16.msra.mxu0 0
    %223 = vmatprep.subr.bf16.mxu0 0
    %224 = vmatpush1.bf16.msra.mxu0 0
    %225 = vmatprep.mubr.bf16.mxu0 0
    %226 = vmatmul.mubr.bf16.gmra.mrb[0].mxu0 %v191
    %v227 = vpop.f32.mrb[0].mxu0
    %v228 = vadd.f32 %v176, %v227
    %v229 = vpop.f32.mrb[0].mxu0
    %v230 = vpop.f32.mrb[0].mxu0
    %v231 = vpop.f32.mrb[0].mxu0
    %232 = vdwg.mxu0
    %233 = vst [vmem:[#allocation2] sm:$0x3] %v228
    // Predicated region
    $region30: #{roberta_for_sequence_classification.7} parent=1 // pred_check
      _
    $region31: #{roberta_for_sequence_classification.7} parent=1 // pred_check_branch
      %235 = sbr.rel (0) target = $region33
    $region32: #{roberta_for_sequence_classification.7} parent=1 // pred_region
      %s237 = ssub.s32 32, 32
      %238 = vsyncadd [#allocation3], %s237
      %s240 = sshll.u32 [#allocation2], 4
      %s241 = int_to_ptr.vmem [resolvable:$true] %s240
      %243 = dma.vmem_to_hbm [thread:$0]  %s241, 32, %s7, [#allocation3]
    $region33: #{roberta_for_sequence_classification.7} parent=1 // pred_fallthru
      _
    // Predicated region
    $region34: #{roberta_for_sequence_classification.7} parent=1 // pred_check
      _
    $region35: #{roberta_for_sequence_classification.7} parent=1 // pred_check_branch
      %245 = sbr.rel (0) target = $region37
    $region36: #{roberta_for_sequence_classification.7} parent=1 // pred_region
      %246 = dma.done [#allocation3], 32
    $region37: #{roberta_for_sequence_classification.7} parent=1 // pred_fallthru
      _
    %247 = vsyncpa [#allocation3], 1

// kernel: roberta_for_sequence_classification.5
$region0: #{roberta_for_sequence_classification.5}
  #allocation0 [shape = 'u32[]', space=smem, size = 0x4, offset = 0x4, fixed_abs, tag = 'smem constant byte address 0x4 - core index']
  #allocation1 [shape = 'u32[144,128]{1,0:T(1,128)}', space=vmem, size = 0x12000, scoped, tag = 'internal scratch']
  %s0 = inlined_call_operand.vmem [shape: f32[2,8,32], index: 0, kind: input, shape index: {}]
  %s1 = inlined_call_operand.vmem [shape: f32[2,1,8], index: 1, kind: input, shape index: {}]
  %s2 = inlined_call_operand.vmem [shape: bf16[32,96], index: 2, kind: input, shape index: {}]
  %s3 = inlined_call_operand.vmem [shape: f32[1,96], index: 3, kind: input, shape index: {}]
  %s4 = inlined_call_operand.vmem [shape: bf16[4,8,32], index: 4, kind: input, shape index: {}]
  %s5 = inlined_call_operand.vmem [shape: f32[1,32], index: 5, kind: input, shape index: {}]
  %s6 = inlined_call_operand.vmem [shape: f32[1,32], index: 6, kind: input, shape index: {}]
  %s7 = inlined_call_operand.vmem [shape: f32[1,32], index: 7, kind: input, shape index: {}]
  %s8 = inlined_call_operand.vmem [shape: bf16[32,64], index: 8, kind: input, shape index: {}]
  %s9 = inlined_call_operand.vmem [shape: f32[1,64], index: 9, kind: input, shape index: {}]
  %s10 = inlined_call_operand.vmem [shape: bf16[64,32], index: 10, kind: input, shape index: {}]
  %s11 = inlined_call_operand.vmem [shape: f32[1,32], index: 11, kind: input, shape index: {}]
  %s12 = inlined_call_operand.vmem [shape: f32[1,32], index: 12, kind: input, shape index: {}]
  %s13 = inlined_call_operand.vmem [shape: f32[1,32], index: 13, kind: input, shape index: {}]
  %s14 = inlined_call_operand.vmem [shape: f32[2,8,32], index: 14, kind: output, shape index: {}]
  %s15 = sld [smem:[#allocation0]]
  $region89: #{roberta_for_sequence_classification.5} parent=0
    _
  %s17 = ssub.s32 1, %s15
  %s18 = scalar_select 0, %s17, %s15
  loop: start=0, step=1, limit=4
  $region2: #{roberta_for_sequence_classification.5} parent=0 // loop_pre_header
    _
  $region3: #{roberta_for_sequence_classification.5} parent=0 // loop_header
    %s20 = sphi 0, %s24
    %p21 = scmp.ge.s32.totalorder %s20, 4
    %s30 = sphi 0, %s32
    %s33 = sphi 0, %s30
    %s34 = sphi 0, %s33
    %s50 = sphi 0, %s34
    %s56 = sphi 0, %s58
    %s59 = sphi 0, %s56
    %s60 = sphi 0, %s59
    %s76 = sphi 0, %s60
    %s80 = sphi 0, %s80
    %s82 = sphi 0, %s80
    %s83 = sphi 0, %s82
    %s97 = sphi 0, %s83
    %s101 = sphi 0, %s101
    %s103 = sphi 0, %s101
    %s104 = sphi 0, %s103
    %s118 = sphi 0, %s104
    %s122 = sphi 0, %s122
    %s124 = sphi 0, %s122
    %s125 = sphi 0, %s124
    %s139 = sphi 0, %s125
    %s143 = sphi 0, %s143
    %s145 = sphi 0, %s143
    %s146 = sphi 0, %s145
    %s160 = sphi 0, %s146
    %s164 = sphi 0, %s164
    %s166 = sphi 0, %s164
    %s167 = sphi 0, %s166
    %s181 = sphi 0, %s167
    %s185 = sphi 0, %s185
    %s187 = sphi 0, %s185
    %s188 = sphi 0, %s187
    %s202 = sphi 0, %s188
    %s206 = sphi 0, %s206
    %s208 = sphi 0, %s206
    %s209 = sphi 0, %s208
    %s223 = sphi 0, %s209
    %s227 = sphi 0, %s227
    %s229 = sphi 0, %s227
    %s230 = sphi 0, %s229
    %s244 = sphi 0, %s230
    %s248 = sphi 0, %s248
    %s250 = sphi 0, %s248
    %s251 = sphi 0, %s250
    %s265 = sphi 0, %s251
    %s269 = sphi 0, %s269
    %s271 = sphi 0, %s269
    %s272 = sphi 0, %s271
    %s286 = sphi 0, %s272
    %s290 = sphi 0, %s290
    %s292 = sphi 0, %s290
    %s293 = sphi 0, %s292
    %s307 = sphi 0, %s293
    %s311 = sphi 0, %s311
    %s313 = sphi 0, %s311
    %s314 = sphi 0, %s313
    %s328 = sphi 0, %s314
    %s334 = sphi 0, %s336
    %s337 = sphi 0, %s334
    %s338 = sphi 0, %s337
    %s354 = sphi 0, %s338
  $region4: #{roberta_for_sequence_classification.5} parent=0 // loop_header_branch
    %23 = sbr.rel (%p21) target = $region8
  $region5: #{roberta_for_sequence_classification.5} parent=0 // loop_body
    %s25 = ssub.s32 %s20, 1
    %s26 = ssub.s32 %s20, 2
    %s27 = sadd.s32 %s20, 1
    %s28 = ssub.s32 %s20, %s27
    %p29 = scmp.eq.s32.totalorder %s28, 0
    %s31 = sadd.s32 %s30, 1
    %s32 = scalar_select %p29, %s30, %s31
    %p35 = pneg %p29
    %p36 = scmp.eq.s32.totalorder %s20, 1
    %p37 = por %p35, %p36
    %p38 = scmp.ne.s32.totalorder %s30, %s33
    %p39 = scmp.eq.s32.totalorder %s20, 0
    %p40 = por %p38, %p39
    %p41 = scmp.ne.s32.totalorder %s30, %s33
    %p42 = scmp.eq.s32.totalorder %s25, 1
    %p43 = por %p41, %p42
    %p44 = scmp.ne.s32.totalorder %s33, %s34
    %p45 = scmp.eq.s32.totalorder %s25, 0
    %p46 = por %p44, %p45
    %p47 = scmp.ne.s32.totalorder %s33, %s34
    %p48 = scmp.eq.s32.totalorder %s26, 1
    %p49 = por %p47, %p48
    %p51 = scmp.ne.s32.totalorder %s34, %s50
    %p52 = scmp.eq.s32.totalorder %s26, 0
    %p53 = por %p51, %p52
    %s54 = ssub.s32 %s20, %s27
    %p55 = scmp.eq.s32.totalorder %s54, 0
    %s57 = sadd.s32 %s56, 1
    %s58 = scalar_select %p55, %s56, %s57
    %p61 = pneg %p55
    %p62 = scmp.eq.s32.totalorder %s20, 1
    %p63 = por %p61, %p62
    %p64 = scmp.ne.s32.totalorder %s56, %s59
    %p65 = scmp.eq.s32.totalorder %s20, 0
    %p66 = por %p64, %p65
    %p67 = scmp.ne.s32.totalorder %s56, %s59
    %p68 = scmp.eq.s32.totalorder %s25, 1
    %p69 = por %p67, %p68
    %p70 = scmp.ne.s32.totalorder %s59, %s60
    %p71 = scmp.eq.s32.totalorder %s25, 0
    %p72 = por %p70, %p71
    %p73 = scmp.ne.s32.totalorder %s59, %s60
    %p74 = scmp.eq.s32.totalorder %s26, 1
    %p75 = por %p73, %p74
    %p77 = scmp.ne.s32.totalorder %s60, %s76
    %p78 = scmp.eq.s32.totalorder %s26, 0
    %p79 = por %p77, %p78
    %s81 = sadd.s32 %s80, 1
    %p84 = scmp.eq.s32.totalorder %s20, 1
    %p85 = scmp.ne.s32.totalorder %s80, %s82
    %p86 = scmp.eq.s32.totalorder %s20, 0
    %p87 = por %p85, %p86
    %p88 = scmp.ne.s32.totalorder %s80, %s82
    %p89 = scmp.eq.s32.totalorder %s25, 1
    %p90 = por %p88, %p89
    %p91 = scmp.ne.s32.totalorder %s82, %s83
    %p92 = scmp.eq.s32.totalorder %s25, 0
    %p93 = por %p91, %p92
    %p94 = scmp.ne.s32.totalorder %s82, %s83
    %p95 = scmp.eq.s32.totalorder %s26, 1
    %p96 = por %p94, %p95
    %p98 = scmp.ne.s32.totalorder %s83, %s97
    %p99 = scmp.eq.s32.totalorder %s26, 0
    %p100 = por %p98, %p99
    %s102 = sadd.s32 %s101, 1
    %p105 = scmp.eq.s32.totalorder %s20, 1
    %p106 = scmp.ne.s32.totalorder %s101, %s103
    %p107 = scmp.eq.s32.totalorder %s20, 0
    %p108 = por %p106, %p107
    %p109 = scmp.ne.s32.totalorder %s101, %s103
    %p110 = scmp.eq.s32.totalorder %s25, 1
    %p111 = por %p109, %p110
    %p112 = scmp.ne.s32.totalorder %s103, %s104
    %p113 = scmp.eq.s32.totalorder %s25, 0
    %p114 = por %p112, %p113
    %p115 = scmp.ne.s32.totalorder %s103, %s104
    %p116 = scmp.eq.s32.totalorder %s26, 1
    %p117 = por %p115, %p116
    %p119 = scmp.ne.s32.totalorder %s104, %s118
    %p120 = scmp.eq.s32.totalorder %s26, 0
    %p121 = por %p119, %p120
    %s123 = sadd.s32 %s122, 1
    %p126 = scmp.eq.s32.totalorder %s20, 1
    %p127 = scmp.ne.s32.totalorder %s122, %s124
    %p128 = scmp.eq.s32.totalorder %s20, 0
    %p129 = por %p127, %p128
    %p130 = scmp.ne.s32.totalorder %s122, %s124
    %p131 = scmp.eq.s32.totalorder %s25, 1
    %p132 = por %p130, %p131
    %p133 = scmp.ne.s32.totalorder %s124, %s125
    %p134 = scmp.eq.s32.totalorder %s25, 0
    %p135 = por %p133, %p134
    %p136 = scmp.ne.s32.totalorder %s124, %s125
    %p137 = scmp.eq.s32.totalorder %s26, 1
    %p138 = por %p136, %p137
    %p140 = scmp.ne.s32.totalorder %s125, %s139
    %p141 = scmp.eq.s32.totalorder %s26, 0
    %p142 = por %p140, %p141
    %s144 = sadd.s32 %s143, 1
    %p147 = scmp.eq.s32.totalorder %s20, 1
    %p148 = scmp.ne.s32.totalorder %s143, %s145
    %p149 = scmp.eq.s32.totalorder %s20, 0
    %p150 = por %p148, %p149
    %p151 = scmp.ne.s32.totalorder %s143, %s145
    %p152 = scmp.eq.s32.totalorder %s25, 1
    %p153 = por %p151, %p152
    %p154 = scmp.ne.s32.totalorder %s145, %s146
    %p155 = scmp.eq.s32.totalorder %s25, 0
    %p156 = por %p154, %p155
    %p157 = scmp.ne.s32.totalorder %s145, %s146
    %p158 = scmp.eq.s32.totalorder %s26, 1
    %p159 = por %p157, %p158
    %p161 = scmp.ne.s32.totalorder %s146, %s160
    %p162 = scmp.eq.s32.totalorder %s26, 0
    %p163 = por %p161, %p162
    %s165 = sadd.s32 %s164, 1
    %p168 = scmp.eq.s32.totalorder %s20, 1
    %p169 = scmp.ne.s32.totalorder %s164, %s166
    %p170 = scmp.eq.s32.totalorder %s20, 0
    %p171 = por %p169, %p170
    %p172 = scmp.ne.s32.totalorder %s164, %s166
    %p173 = scmp.eq.s32.totalorder %s25, 1
    %p174 = por %p172, %p173
    %p175 = scmp.ne.s32.totalorder %s166, %s167
    %p176 = scmp.eq.s32.totalorder %s25, 0
    %p177 = por %p175, %p176
    %p178 = scmp.ne.s32.totalorder %s166, %s167
    %p179 = scmp.eq.s32.totalorder %s26, 1
    %p180 = por %p178, %p179
    %p182 = scmp.ne.s32.totalorder %s167, %s181
    %p183 = scmp.eq.s32.totalorder %s26, 0
    %p184 = por %p182, %p183
    %s186 = sadd.s32 %s185, 1
    %p189 = scmp.eq.s32.totalorder %s20, 1
    %p190 = scmp.ne.s32.totalorder %s185, %s187
    %p191 = scmp.eq.s32.totalorder %s20, 0
    %p192 = por %p190, %p191
    %p193 = scmp.ne.s32.totalorder %s185, %s187
    %p194 = scmp.eq.s32.totalorder %s25, 1
    %p195 = por %p193, %p194
    %p196 = scmp.ne.s32.totalorder %s187, %s188
    %p197 = scmp.eq.s32.totalorder %s25, 0
    %p198 = por %p196, %p197
    %p199 = scmp.ne.s32.totalorder %s187, %s188
    %p200 = scmp.eq.s32.totalorder %s26, 1
    %p201 = por %p199, %p200
    %p203 = scmp.ne.s32.totalorder %s188, %s202
    %p204 = scmp.eq.s32.totalorder %s26, 0
    %p205 = por %p203, %p204
    %s207 = sadd.s32 %s206, 1
    %p210 = scmp.eq.s32.totalorder %s20, 1
    %p211 = scmp.ne.s32.totalorder %s206, %s208
    %p212 = scmp.eq.s32.totalorder %s20, 0
    %p213 = por %p211, %p212
    %p214 = scmp.ne.s32.totalorder %s206, %s208
    %p215 = scmp.eq.s32.totalorder %s25, 1
    %p216 = por %p214, %p215
    %p217 = scmp.ne.s32.totalorder %s208, %s209
    %p218 = scmp.eq.s32.totalorder %s25, 0
    %p219 = por %p217, %p218
    %p220 = scmp.ne.s32.totalorder %s208, %s209
    %p221 = scmp.eq.s32.totalorder %s26, 1
    %p222 = por %p220, %p221
    %p224 = scmp.ne.s32.totalorder %s209, %s223
    %p225 = scmp.eq.s32.totalorder %s26, 0
    %p226 = por %p224, %p225
    %s228 = sadd.s32 %s227, 1
    %p231 = scmp.eq.s32.totalorder %s20, 1
    %p232 = scmp.ne.s32.totalorder %s227, %s229
    %p233 = scmp.eq.s32.totalorder %s20, 0
    %p234 = por %p232, %p233
    %p235 = scmp.ne.s32.totalorder %s227, %s229
    %p236 = scmp.eq.s32.totalorder %s25, 1
    %p237 = por %p235, %p236
    %p238 = scmp.ne.s32.totalorder %s229, %s230
    %p239 = scmp.eq.s32.totalorder %s25, 0
    %p240 = por %p238, %p239
    %p241 = scmp.ne.s32.totalorder %s229, %s230
    %p242 = scmp.eq.s32.totalorder %s26, 1
    %p243 = por %p241, %p242
    %p245 = scmp.ne.s32.totalorder %s230, %s244
    %p246 = scmp.eq.s32.totalorder %s26, 0
    %p247 = por %p245, %p246
    %s249 = sadd.s32 %s248, 1
    %p252 = scmp.eq.s32.totalorder %s20, 1
    %p253 = scmp.ne.s32.totalorder %s248, %s250
    %p254 = scmp.eq.s32.totalorder %s20, 0
    %p255 = por %p253, %p254
    %p256 = scmp.ne.s32.totalorder %s248, %s250
    %p257 = scmp.eq.s32.totalorder %s25, 1
    %p258 = por %p256, %p257
    %p259 = scmp.ne.s32.totalorder %s250, %s251
    %p260 = scmp.eq.s32.totalorder %s25, 0
    %p261 = por %p259, %p260
    %p262 = scmp.ne.s32.totalorder %s250, %s251
    %p263 = scmp.eq.s32.totalorder %s26, 1
    %p264 = por %p262, %p263
    %p266 = scmp.ne.s32.totalorder %s251, %s265
    %p267 = scmp.eq.s32.totalorder %s26, 0
    %p268 = por %p266, %p267
    %s270 = sadd.s32 %s269, 1
    %p273 = scmp.eq.s32.totalorder %s20, 1
    %p274 = scmp.ne.s32.totalorder %s269, %s271
    %p275 = scmp.eq.s32.totalorder %s20, 0
    %p276 = por %p274, %p275
    %p277 = scmp.ne.s32.totalorder %s269, %s271
    %p278 = scmp.eq.s32.totalorder %s25, 1
    %p279 = por %p277, %p278
    %p280 = scmp.ne.s32.totalorder %s271, %s272
    %p281 = scmp.eq.s32.totalorder %s25, 0
    %p282 = por %p280, %p281
    %p283 = scmp.ne.s32.totalorder %s271, %s272
    %p284 = scmp.eq.s32.totalorder %s26, 1
    %p285 = por %p283, %p284
    %p287 = scmp.ne.s32.totalorder %s272, %s286
    %p288 = scmp.eq.s32.totalorder %s26, 0
    %p289 = por %p287, %p288
    %s291 = sadd.s32 %s290, 1
    %p294 = scmp.eq.s32.totalorder %s20, 1
    %p295 = scmp.ne.s32.totalorder %s290, %s292
    %p296 = scmp.eq.s32.totalorder %s20, 0
    %p297 = por %p295, %p296
    %p298 = scmp.ne.s32.totalorder %s290, %s292
    %p299 = scmp.eq.s32.totalorder %s25, 1
    %p300 = por %p298, %p299
    %p301 = scmp.ne.s32.totalorder %s292, %s293
    %p302 = scmp.eq.s32.totalorder %s25, 0
    %p303 = por %p301, %p302
    %p304 = scmp.ne.s32.totalorder %s292, %s293
    %p305 = scmp.eq.s32.totalorder %s26, 1
    %p306 = por %p304, %p305
    %p308 = scmp.ne.s32.totalorder %s293, %s307
    %p309 = scmp.eq.s32.totalorder %s26, 0
    %p310 = por %p308, %p309
    %s312 = sadd.s32 %s311, 1
    %p315 = scmp.eq.s32.totalorder %s20, 1
    %p316 = scmp.ne.s32.totalorder %s311, %s313
    %p317 = scmp.eq.s32.totalorder %s20, 0
    %p318 = por %p316, %p317
    %p319 = scmp.ne.s32.totalorder %s311, %s313
    %p320 = scmp.eq.s32.totalorder %s25, 1
    %p321 = por %p319, %p320
    %p322 = scmp.ne.s32.totalorder %s313, %s314
    %p323 = scmp.eq.s32.totalorder %s25, 0
    %p324 = por %p322, %p323
    %p325 = scmp.ne.s32.totalorder %s313, %s314
    %p326 = scmp.eq.s32.totalorder %s26, 1
    %p327 = por %p325, %p326
    %p329 = scmp.ne.s32.totalorder %s314, %s328
    %p330 = scmp.eq.s32.totalorder %s26, 0
    %p331 = por %p329, %p330
    %s332 = ssub.s32 %s20, %s27
    %p333 = scmp.eq.s32.totalorder %s332, 0
    %s335 = sadd.s32 %s334, 1
    %s336 = scalar_select %p333, %s334, %s335
    %p339 = pneg %p333
    %p340 = scmp.eq.s32.totalorder %s20, 1
    %p341 = por %p339, %p340
    %p342 = scmp.ne.s32.totalorder %s334, %s337
    %p343 = scmp.eq.s32.totalorder %s20, 0
    %p344 = por %p342, %p343
    %p345 = scmp.ne.s32.totalorder %s334, %s337
    %p346 = scmp.eq.s32.totalorder %s25, 1
    %p347 = por %p345, %p346
    %p348 = scmp.ne.s32.totalorder %s337, %s338
    %p349 = scmp.eq.s32.totalorder %s25, 0
    %p350 = por %p348, %p349
    %p351 = scmp.ne.s32.totalorder %s337, %s338
    %p352 = scmp.eq.s32.totalorder %s26, 1
    %p353 = por %p351, %p352
    %p355 = scmp.ne.s32.totalorder %s338, %s354
    %p356 = scmp.eq.s32.totalorder %s26, 0
    %p357 = por %p355, %p356
    %p358 = scmp.le.s32.totalorder 1, %s20
    %p359 = scmp.lt.s32.totalorder %s20, 3
    %p360 = pnand %p358, %p359
    %p361 = pneg %p360
    // Predicated region
    $region9: #{roberta_for_sequence_classification.5} parent=5 // pred_check
      _
    $region10: #{roberta_for_sequence_classification.5} parent=5 // pred_check_branch
      %363 = sbr.rel (%p360) target = $region12
    $region11: #{roberta_for_sequence_classification.5} parent=5 // pred_region
      %s364 = ssub.s32 %s20, 1
      // Predicated region
      $region13: #{roberta_for_sequence_classification.5} parent=11 // pred_check
        %p365 = pneg %p93
      $region14: #{roberta_for_sequence_classification.5} parent=11 // pred_check_branch
        %367 = sbr.rel (%p365) target = $region16
      $region15: #{roberta_for_sequence_classification.5} parent=11 // pred_region
        _
      $region16: #{roberta_for_sequence_classification.5} parent=11 // pred_fallthru
        _
      // Predicated region
      $region17: #{roberta_for_sequence_classification.5} parent=11 // pred_check
        %p368 = pneg %p114
      $region18: #{roberta_for_sequence_classification.5} parent=11 // pred_check_branch
        %370 = sbr.rel (%p368) target = $region20
      $region19: #{roberta_for_sequence_classification.5} parent=11 // pred_region
        _
      $region20: #{roberta_for_sequence_classification.5} parent=11 // pred_fallthru
        _
      // Predicated region
      $region21: #{roberta_for_sequence_classification.5} parent=11 // pred_check
        %p371 = pneg %p135
      $region22: #{roberta_for_sequence_classification.5} parent=11 // pred_check_branch
        %373 = sbr.rel (%p371) target = $region24
      $region23: #{roberta_for_sequence_classification.5} parent=11 // pred_region
        _
      $region24: #{roberta_for_sequence_classification.5} parent=11 // pred_fallthru
        _
      // Predicated region
      $region25: #{roberta_for_sequence_classification.5} parent=11 // pred_check
        %p374 = pneg %p156
      $region26: #{roberta_for_sequence_classification.5} parent=11 // pred_check_branch
        %376 = sbr.rel (%p374) target = $region28
      $region27: #{roberta_for_sequence_classification.5} parent=11 // pred_region
        _
      $region28: #{roberta_for_sequence_classification.5} parent=11 // pred_fallthru
        _
      // Predicated region
      $region29: #{roberta_for_sequence_classification.5} parent=11 // pred_check
        %p377 = pneg %p177
      $region30: #{roberta_for_sequence_classification.5} parent=11 // pred_check_branch
        %379 = sbr.rel (%p377) target = $region32
      $region31: #{roberta_for_sequence_classification.5} parent=11 // pred_region
        _
      $region32: #{roberta_for_sequence_classification.5} parent=11 // pred_fallthru
        _
      // Predicated region
      $region33: #{roberta_for_sequence_classification.5} parent=11 // pred_check
        %p380 = pneg %p198
      $region34: #{roberta_for_sequence_classification.5} parent=11 // pred_check_branch
        %382 = sbr.rel (%p380) target = $region36
      $region35: #{roberta_for_sequence_classification.5} parent=11 // pred_region
        _
      $region36: #{roberta_for_sequence_classification.5} parent=11 // pred_fallthru
        _
      // Predicated region
      $region37: #{roberta_for_sequence_classification.5} parent=11 // pred_check
        %p383 = pneg %p219
      $region38: #{roberta_for_sequence_classification.5} parent=11 // pred_check_branch
        %385 = sbr.rel (%p383) target = $region40
      $region39: #{roberta_for_sequence_classification.5} parent=11 // pred_region
        _
      $region40: #{roberta_for_sequence_classification.5} parent=11 // pred_fallthru
        _
      // Predicated region
      $region41: #{roberta_for_sequence_classification.5} parent=11 // pred_check
        %p386 = pneg %p240
      $region42: #{roberta_for_sequence_classification.5} parent=11 // pred_check_branch
        %388 = sbr.rel (%p386) target = $region44
      $region43: #{roberta_for_sequence_classification.5} parent=11 // pred_region
        _
      $region44: #{roberta_for_sequence_classification.5} parent=11 // pred_fallthru
        _
      // Predicated region
      $region45: #{roberta_for_sequence_classification.5} parent=11 // pred_check
        %p389 = pneg %p261
      $region46: #{roberta_for_sequence_classification.5} parent=11 // pred_check_branch
        %391 = sbr.rel (%p389) target = $region48
      $region47: #{roberta_for_sequence_classification.5} parent=11 // pred_region
        _
      $region48: #{roberta_for_sequence_classification.5} parent=11 // pred_fallthru
        _
      // Predicated region
      $region49: #{roberta_for_sequence_classification.5} parent=11 // pred_check
        %p392 = pneg %p282
      $region50: #{roberta_for_sequence_classification.5} parent=11 // pred_check_branch
        %394 = sbr.rel (%p392) target = $region52
      $region51: #{roberta_for_sequence_classification.5} parent=11 // pred_region
        _
      $region52: #{roberta_for_sequence_classification.5} parent=11 // pred_fallthru
        _
      // Predicated region
      $region53: #{roberta_for_sequence_classification.5} parent=11 // pred_check
        %p395 = pneg %p303
      $region54: #{roberta_for_sequence_classification.5} parent=11 // pred_check_branch
        %397 = sbr.rel (%p395) target = $region56
      $region55: #{roberta_for_sequence_classification.5} parent=11 // pred_region
        _
      $region56: #{roberta_for_sequence_classification.5} parent=11 // pred_fallthru
        _
      // Predicated region
      $region57: #{roberta_for_sequence_classification.5} parent=11 // pred_check
        %p398 = pneg %p324
      $region58: #{roberta_for_sequence_classification.5} parent=11 // pred_check_branch
        %400 = sbr.rel (%p398) target = $region60
      $region59: #{roberta_for_sequence_classification.5} parent=11 // pred_region
        _
      $region60: #{roberta_for_sequence_classification.5} parent=11 // pred_fallthru
        _
    $region12: #{roberta_for_sequence_classification.5} parent=5 // pred_fallthru
      _
    %p401 = scmp.lt.s32.totalorder %s20, 2
    // Predicated region
    $region61: #{roberta_for_sequence_classification.5} parent=5 // pred_check
      %p402 = pneg %p401
    $region62: #{roberta_for_sequence_classification.5} parent=5 // pred_check_branch
      %404 = sbr.rel (%p402) target = $region64
    $region63: #{roberta_for_sequence_classification.5} parent=5 // pred_region
      // Predicated region
      $region65: #{roberta_for_sequence_classification.5} parent=63 // pred_check
        %p405 = pneg %p40
      $region66: #{roberta_for_sequence_classification.5} parent=63 // pred_check_branch
        %407 = sbr.rel (%p405) target = $region68
      $region67: #{roberta_for_sequence_classification.5} parent=63 // pred_region
        %p408 = scmp.lt.s32.totalorder %s20, 1
        %s409 = scalar_select %p408, %s20, 1
        %s410 = smul.addr %s409, 8
        %s411 = scalar_lea.vmem %s0, %s410
      $region68: #{roberta_for_sequence_classification.5} parent=63 // pred_fallthru
        _
      // Predicated region
      $region69: #{roberta_for_sequence_classification.5} parent=63 // pred_check
        %p412 = pneg %p66
      $region70: #{roberta_for_sequence_classification.5} parent=63 // pred_check_branch
        %414 = sbr.rel (%p412) target = $region72
      $region71: #{roberta_for_sequence_classification.5} parent=63 // pred_region
        %p415 = scmp.lt.s32.totalorder %s20, 1
        %s416 = scalar_select %p415, %s20, 1
        %s417 = scalar_lea.vmem %s1, %s416
      $region72: #{roberta_for_sequence_classification.5} parent=63 // pred_fallthru
        _
    $region64: #{roberta_for_sequence_classification.5} parent=5 // pred_fallthru
      _
    %p418 = scmp.le.s32.totalorder 1, %s20
    %p419 = scmp.lt.s32.totalorder %s20, 3
    %p420 = pnand %p418, %p419
    %p421 = pneg %p420
    // Predicated region
    $region73: #{roberta_for_sequence_classification.5} parent=5 // pred_check
      _
    $region74: #{roberta_for_sequence_classification.5} parent=5 // pred_check_branch
      %423 = sbr.rel (%p420) target = $region76
    $region75: #{roberta_for_sequence_classification.5} parent=5 // pred_region
      %s424 = ssub.s32 %s20, 1
      %p425 = scmp.lt.s32.totalorder %s25, 1
      %s426 = scalar_select %p425, %s25, 1
      %s427 = smul.addr %s426, 8
      %s428 = scalar_lea.vmem %s0, %s427
      %p429 = pneg %p46
      %p430 = pneg %p43
      %p431 = scmp.lt.s32.totalorder %s25, 1
      %s432 = scalar_select %p431, %s25, 1
      %s433 = scalar_lea.vmem %s1, %s432
      %p434 = pneg %p72
      %p435 = pneg %p69
      %p436 = pneg %p93
      %p437 = pneg %p90
      %p438 = pneg %p114
      %p439 = pneg %p111
      %p440 = pneg %p135
      %p441 = pneg %p132
      %p442 = pneg %p156
      %p443 = pneg %p153
      %p444 = pneg %p177
      %p445 = pneg %p174
      %p446 = pneg %p198
      %p447 = pneg %p195
      %p448 = pneg %p219
      %p449 = pneg %p216
      %p450 = pneg %p240
      %p451 = pneg %p237
      %p452 = pneg %p261
      %p453 = pneg %p258
      %p454 = pneg %p282
      %p455 = pneg %p279
      %p456 = pneg %p303
      %p457 = pneg %p300
      %p458 = pneg %p324
      %p459 = pneg %p321
      %p460 = pneg %p350
      %p461 = pneg %p347
      %p462 = scmp.lt.s32.totalorder %s25, 1
      %s463 = scalar_select %p462, %s25, 1
      %s464 = smul.addr %s463, 8
      %s465 = scalar_lea.vmem %s14, %s464
      %p466 = scmp.lt.s32.totalorder %s25, 1
      %s467 = scalar_select %p466, %s25, 1
      %s468 = smul.addr %s467, 8
      %s469 = scalar_lea.vmem %s0, %s468
      %p470 = scmp.lt.s32.totalorder %s25, 1
      %s471 = scalar_select %p470, %s25, 1
      %s472 = scalar_lea.vmem %s1, %s471
      %p473 = scmp.lt.s32.totalorder %s25, 1
      %s474 = scalar_select %p473, %s25, 1
      %s475 = smul.addr %s474, 8
      %s476 = scalar_lea.vmem %s14, %s475
      %v478 = vld [vmem:[%s469] sm:$0xff]
      %v479 = vpack.c.bf16 %v478, %v478
      %v480 = vld [vmem:[%s2] sm:$0xf]
      %v481 = vld [vmem:[%s2 + $0x4] sm:$0xf]
      %v482 = vld [vmem:[%s2 + $0x8] sm:$0xf]
      %v483 = vld [vmem:[%s2 + $0xc] sm:$0xf]
      %v484 = vld [vmem:[%s3] sm:$0x1]
      %v486 = vlaneseq
      %v487 = vshrl.u32 %v486, 7
      %v488 = vsub.s32 0, %v487
      %v489 = vrot.slane %v484, %v488
      %v495 = vunpack.c.l.b16 %v480
      %v496 = vunpack.c.l.b16 %v481
      %v497 = vunpack.c.l.b16 %v482
      %v498 = vunpack.c.l.b16 %v483
      %v499 = vpack.c.b16 %v496, %v495
      %v500 = vpack.c.b16 %v498, %v497
      %vm503 = vcmask 261120
      %v505 = vsel %vm503, %v479, 0
      %507 = vmatprep.subr.bf16.mxu0 0
      %508 = vmatpush1.bf16.msra.mxu0 %v499
      %509 = vmatprep.subr.bf16.mxu0 0
      %510 = vmatpush1.bf16.msra.mxu0 %v500
      %511 = vmatprep.subr.bf16.mxu0 0
      %512 = vmatpush1.bf16.msra.mxu0 0
      %513 = vmatprep.subr.bf16.mxu0 0
      %514 = vmatpush1.bf16.msra.mxu0 0
      %515 = vmatprep.subr.bf16.mxu0 0
      %516 = vmatpush1.bf16.msra.mxu0 0
      %517 = vmatprep.subr.bf16.mxu0 0
      %518 = vmatpush1.bf16.msra.mxu0 0
      %519 = vmatprep.subr.bf16.mxu0 0
      %520 = vmatpush1.bf16.msra.mxu0 0
      %521 = vmatprep.subr.bf16.mxu0 0
      %522 = vmatpush1.bf16.msra.mxu0 0
      %523 = vmatprep.subr.bf16.mxu0 0
      %524 = vmatpush1.bf16.msra.mxu0 0
      %525 = vmatprep.subr.bf16.mxu0 0
      %526 = vmatpush1.bf16.msra.mxu0 0
      %527 = vmatprep.subr.bf16.mxu0 0
      %528 = vmatpush1.bf16.msra.mxu0 0
      %529 = vmatprep.subr.bf16.mxu0 0
      %530 = vmatpush1.bf16.msra.mxu0 0
      %531 = vmatprep.subr.bf16.mxu0 0
      %532 = vmatpush1.bf16.msra.mxu0 0
      %533 = vmatprep.subr.bf16.mxu0 0
      %534 = vmatpush1.bf16.msra.mxu0 0
      %535 = vmatprep.subr.bf16.mxu0 0
      %536 = vmatpush1.bf16.msra.mxu0 0
      %537 = vmatprep.subr.bf16.mxu0 0
      %538 = vmatpush1.bf16.msra.mxu0 0
      %539 = vmatprep.mubr.bf16.mxu0 0
      %540 = vmatmul.mubr.bf16.gmra.mrb[0].mxu0 %v505
      %v541 = vpop.f32.mrb[0].mxu0
      %v542 = vadd.f32 %v489, %v541
      %v543 = vpop.f32.mrb[0].mxu0
      %v544 = vpop.f32.mrb[0].mxu0
      %v545 = vpop.f32.mrb[0].mxu0
      %546 = vdwg.mxu0
      %v547 = vpack.c.bf16 %v542, %v542
      %v548 = vld [vmem:[%s472] sm:$0x1]
      %v549 = vsub.f32 1.0, %v548
      %v550 = vmul.f32 %v549, -10000.0
      %v551 = vld [vmem:[%s5] sm:$0x1]
      %v553 = vlaneseq
      %v554 = vshrl.u32 %v553, 7
      %v555 = vsub.s32 0, %v554
      %v556 = vrot.slane %v551, %v555
      %v558 = vadd.f32 %v556, %v478
      %560 = vrot.lane.b32.xlu0 %v547, 96
      %v561 = vpop.permute.xlu0 %560
      %vm562 = vcmask 64512
      %v564 = vsel %vm562, %v547, 0
      %v567 = vsel %vm562, %v561, 0
      %569 = vmatprep.subr.bf16.mxu0 0
      %570 = vmatpush1.bf16.xpose.msra.mxu0 %v567
      %571 = vmatprep.subr.bf16.mxu0 0
      %572 = vmatpush1.bf16.xpose.msra.mxu0 0
      %573 = vmatprep.subr.bf16.mxu0 0
      %574 = vmatpush1.bf16.xpose.msra.mxu0 0
      %575 = vmatprep.subr.bf16.mxu0 0
      %576 = vmatpush1.bf16.xpose.msra.mxu0 0
      %577 = vmatprep.subr.bf16.mxu0 0
      %578 = vmatpush1.bf16.xpose.msra.mxu0 0
      %579 = vmatprep.subr.bf16.mxu0 0
      %580 = vmatpush1.bf16.xpose.msra.mxu0 0
      %581 = vmatprep.subr.bf16.mxu0 0
      %582 = vmatpush1.bf16.xpose.msra.mxu0 0
      %583 = vmatprep.subr.bf16.mxu0 0
      %584 = vmatpush1.bf16.xpose.msra.mxu0 0
      %585 = vmatprep.subr.bf16.mxu0 0
      %586 = vmatpush1.bf16.xpose.msra.mxu0 0
      %587 = vmatprep.subr.bf16.mxu0 0
      %588 = vmatpush1.bf16.xpose.msra.mxu0 0
      %589 = vmatprep.subr.bf16.mxu0 0
      %590 = vmatpush1.bf16.xpose.msra.mxu0 0
      %591 = vmatprep.subr.bf16.mxu0 0
      %592 = vmatpush1.bf16.xpose.msra.mxu0 0
      %593 = vmatprep.subr.bf16.mxu0 0
      %594 = vmatpush1.bf16.xpose.msra.mxu0 0
      %595 = vmatprep.subr.bf16.mxu0 0
      %596 = vmatpush1.bf16.xpose.msra.mxu0 0
      %597 = vmatprep.subr.bf16.mxu0 0
      %598 = vmatpush1.bf16.xpose.msra.mxu0 0
      %599 = vmatprep.subr.bf16.mxu0 0
      %600 = vmatpush1.bf16.xpose.msra.mxu0 0
      %601 = vmatprep.mubr.bf16.mxu0 0
      %602 = vmatmul.mubr.bf16.gmra.mrb[0].mxu0 %v564
      %v603 = vpop.f32.mrb[0].mxu0
      %v604 = vadd.f32 0.0, %v603
      %v605 = vpop.f32.mrb[0].mxu0
      %v606 = vpop.f32.mrb[0].mxu0
      %v607 = vpop.f32.mrb[0].mxu0
      %608 = vdwg.mxu0
      %v609 = vmul.f32 %v604, 0.35355338
      %v611 = vlaneseq
      %v612 = vshrl.u32 %v611, 7
      %v613 = vsub.s32 0, %v612
      %v614 = vrot.slane %v550, %v613
      %v616 = vadd.f32 %v609, %v614
      %v617 = vsel %vm562, %v616, -inf
      %618 = vmax.xlane.f32.xlu0 %v617
      %v619 = vpop.xlane.xlu0 %618
      %v620 = vsub.f32 %v616, %v619
      %v621 = vmul.f32 %v620, 1.442695
      %v622 = vpow.pop %v621
      %v623 = vsel %vm562, %v622, 0.0
      %624 = vadd.xlane.f32.xlu0 %v623
      %v625 = vpop.xlane.xlu0 %624
      %v626 = vrcp.pop %v625
      %v627 = vmul.f32 %v622, %v626
      %v628 = vpack.c.bf16 %v627, %v627
      %629 = vrot.lane.b32.xlu0 %v547, 64
      %v630 = vpop.permute.xlu0 %629
      %v632 = vsel %vm562, %v628, 0
      %vm634 = vcmask 1043456
      %v636 = vsel %vm634, %v630, 0
      %638 = vmatprep.subr.bf16.mxu0 0
      %639 = vmatpush1.bf16.msra.mxu0 %v636
      %640 = vmatprep.subr.bf16.mxu0 0
      %641 = vmatpush1.bf16.msra.mxu0 0
      %642 = vmatprep.subr.bf16.mxu0 0
      %643 = vmatpush1.bf16.msra.mxu0 0
      %644 = vmatprep.subr.bf16.mxu0 0
      %645 = vmatpush1.bf16.msra.mxu0 0
      %646 = vmatprep.subr.bf16.mxu0 0
      %647 = vmatpush1.bf16.msra.mxu0 0
      %648 = vmatprep.subr.bf16.mxu0 0
      %649 = vmatpush1.bf16.msra.mxu0 0
      %650 = vmatprep.subr.bf16.mxu0 0
      %651 = vmatpush1.bf16.msra.mxu0 0
      %652 = vmatprep.subr.bf16.mxu0 0
      %653 = vmatpush1.bf16.msra.mxu0 0
      %654 = vmatprep.subr.bf16.mxu0 0
      %655 = vmatpush1.bf16.msra.mxu0 0
      %656 = vmatprep.subr.bf16.mxu0 0
      %657 = vmatpush1.bf16.msra.mxu0 0
      %658 = vmatprep.subr.bf16.mxu0 0
      %659 = vmatpush1.bf16.msra.mxu0 0
      %660 = vmatprep.subr.bf16.mxu0 0
      %661 = vmatpush1.bf16.msra.mxu0 0
      %662 = vmatprep.subr.bf16.mxu0 0
      %663 = vmatpush1.bf16.msra.mxu0 0
      %664 = vmatprep.subr.bf16.mxu0 0
      %665 = vmatpush1.bf16.msra.mxu0 0
      %666 = vmatprep.subr.bf16.mxu0 0
      %667 = vmatpush1.bf16.msra.mxu0 0
      %668 = vmatprep.subr.bf16.mxu0 0
      %669 = vmatpush1.bf16.msra.mxu0 0
      %670 = vmatprep.mubr.bf16.mxu0 0
      %671 = vmatmul.mubr.bf16.gmra.mrb[0].mxu0 %v632
      %v672 = vpop.f32.mrb[0].mxu0
      %v673 = vadd.f32 0.0, %v672
      %v674 = vpop.f32.mrb[0].mxu0
      %v675 = vpop.f32.mrb[0].mxu0
      %v676 = vpop.f32.mrb[0].mxu0
      %677 = vdwg.mxu0
      %v678 = vpack.c.bf16 %v673, %v673
      %v679 = vld [vmem:[%s4] sm:$0xf]
      %v681 = vsel %vm562, %v678, 0
      %v684 = vsel %vm634, %v679, 0
      %686 = vmatprep.subr.bf16.mxu0 0
      %687 = vmatpush1.bf16.msra.mxu0 %v684
      %688 = vmatprep.subr.bf16.mxu0 0
      %689 = vmatpush1.bf16.msra.mxu0 0
      %690 = vmatprep.subr.bf16.mxu0 0
      %691 = vmatpush1.bf16.msra.mxu0 0
      %692 = vmatprep.subr.bf16.mxu0 0
      %693 = vmatpush1.bf16.msra.mxu0 0
      %694 = vmatprep.subr.bf16.mxu0 0
      %695 = vmatpush1.bf16.msra.mxu0 0
      %696 = vmatprep.subr.bf16.mxu0 0
      %697 = vmatpush1.bf16.msra.mxu0 0
      %698 = vmatprep.subr.bf16.mxu0 0
      %699 = vmatpush1.bf16.msra.mxu0 0
      %700 = vmatprep.subr.bf16.mxu0 0
      %701 = vmatpush1.bf16.msra.mxu0 0
      %702 = vmatprep.subr.bf16.mxu0 0
      %703 = vmatpush1.bf16.msra.mxu0 0
      %704 = vmatprep.subr.bf16.mxu0 0
      %705 = vmatpush1.bf16.msra.mxu0 0
      %706 = vmatprep.subr.bf16.mxu0 0
      %707 = vmatpush1.bf16.msra.mxu0 0
      %708 = vmatprep.subr.bf16.mxu0 0
      %709 = vmatpush1.bf16.msra.mxu0 0
      %710 = vmatprep.subr.bf16.mxu0 0
      %711 = vmatpush1.bf16.msra.mxu0 0
      %712 = vmatprep.subr.bf16.mxu0 0
      %713 = vmatpush1.bf16.msra.mxu0 0
      %714 = vmatprep.subr.bf16.mxu0 0
      %715 = vmatpush1.bf16.msra.mxu0 0
      %716 = vmatprep.subr.bf16.mxu0 0
      %717 = vmatpush1.bf16.msra.mxu0 0
      %718 = vmatprep.mubr.bf16.mxu0 0
      %719 = vmatmul.mubr.bf16.gmra.mrb[0].mxu0 %v681
      %v720 = vpop.f32.mrb[0].mxu0
      %v721 = vadd.f32 0.0, %v720
      %v722 = vpop.f32.mrb[0].mxu0
      %v723 = vpop.f32.mrb[0].mxu0
      %v724 = vpop.f32.mrb[0].mxu0
      %725 = vdwg.mxu0
      %v726 = vadd.f32 %v558, %v721
      %727 = vrot.lane.b32.xlu0 %v547, 120
      %v728 = vpop.permute.xlu0 %727
      %729 = vrot.lane.b32.xlu0 %v547, 88
      %v730 = vpop.permute.xlu0 %729
      %v732 = vsel %vm562, %v728, 0
      %v735 = vsel %vm562, %v730, 0
      %737 = vmatprep.subr.bf16.mxu0 0
      %738 = vmatpush1.bf16.xpose.msra.mxu0 %v735
      %739 = vmatprep.subr.bf16.mxu0 0
      %740 = vmatpush1.bf16.xpose.msra.mxu0 0
      %741 = vmatprep.subr.bf16.mxu0 0
      %742 = vmatpush1.bf16.xpose.msra.mxu0 0
      %743 = vmatprep.subr.bf16.mxu0 0
      %744 = vmatpush1.bf16.xpose.msra.mxu0 0
      %745 = vmatprep.subr.bf16.mxu0 0
      %746 = vmatpush1.bf16.xpose.msra.mxu0 0
      %747 = vmatprep.subr.bf16.mxu0 0
      %748 = vmatpush1.bf16.xpose.msra.mxu0 0
      %749 = vmatprep.subr.bf16.mxu0 0
      %750 = vmatpush1.bf16.xpose.msra.mxu0 0
      %751 = vmatprep.subr.bf16.mxu0 0
      %752 = vmatpush1.bf16.xpose.msra.mxu0 0
      %753 = vmatprep.subr.bf16.mxu0 0
      %754 = vmatpush1.bf16.xpose.msra.mxu0 0
      %755 = vmatprep.subr.bf16.mxu0 0
      %756 = vmatpush1.bf16.xpose.msra.mxu0 0
      %757 = vmatprep.subr.bf16.mxu0 0
      %758 = vmatpush1.bf16.xpose.msra.mxu0 0
      %759 = vmatprep.subr.bf16.mxu0 0
      %760 = vmatpush1.bf16.xpose.msra.mxu0 0
      %761 = vmatprep.subr.bf16.mxu0 0
      %762 = vmatpush1.bf16.xpose.msra.mxu0 0
      %763 = vmatprep.subr.bf16.mxu0 0
      %764 = vmatpush1.bf16.xpose.msra.mxu0 0
      %765 = vmatprep.subr.bf16.mxu0 0
      %766 = vmatpush1.bf16.xpose.msra.mxu0 0
      %767 = vmatprep.subr.bf16.mxu0 0
      %768 = vmatpush1.bf16.xpose.msra.mxu0 0
      %769 = vmatprep.mubr.bf16.mxu0 0
      %770 = vmatmul.mubr.bf16.gmra.mrb[0].mxu0 %v732
      %v771 = vpop.f32.mrb[0].mxu0
      %v772 = vadd.f32 0.0, %v771
      %v773 = vpop.f32.mrb[0].mxu0
      %v774 = vpop.f32.mrb[0].mxu0
      %v775 = vpop.f32.mrb[0].mxu0
      %776 = vdwg.mxu0
      %v777 = vmul.f32 %v772, 0.35355338
      %v778 = vadd.f32 %v777, %v614
      %v779 = vsel %vm562, %v778, -inf
      %780 = vmax.xlane.f32.xlu0 %v779
      %v781 = vpop.xlane.xlu0 %780
      %v782 = vsub.f32 %v778, %v781
      %v783 = vmul.f32 %v782, 1.442695
      %v784 = vpow.pop %v783
      %v785 = vsel %vm562, %v784, 0.0
      %786 = vadd.xlane.f32.xlu0 %v785
      %v787 = vpop.xlane.xlu0 %786
      %v788 = vrcp.pop %v787
      %v789 = vmul.f32 %v784, %v788
      %v790 = vpack.c.bf16 %v789, %v789
      %791 = vrot.lane.b32.xlu0 %v547, 56
      %v792 = vpop.permute.xlu0 %791
      %v794 = vsel %vm562, %v790, 0
      %v797 = vsel %vm634, %v792, 0
      %799 = vmatprep.subr.bf16.mxu0 0
      %800 = vmatpush1.bf16.msra.mxu0 %v797
      %801 = vmatprep.subr.bf16.mxu0 0
      %802 = vmatpush1.bf16.msra.mxu0 0
      %803 = vmatprep.subr.bf16.mxu0 0
      %804 = vmatpush1.bf16.msra.mxu0 0
      %805 = vmatprep.subr.bf16.mxu0 0
      %806 = vmatpush1.bf16.msra.mxu0 0
      %807 = vmatprep.subr.bf16.mxu0 0
      %808 = vmatpush1.bf16.msra.mxu0 0
      %809 = vmatprep.subr.bf16.mxu0 0
      %810 = vmatpush1.bf16.msra.mxu0 0
      %811 = vmatprep.subr.bf16.mxu0 0
      %812 = vmatpush1.bf16.msra.mxu0 0
      %813 = vmatprep.subr.bf16.mxu0 0
      %814 = vmatpush1.bf16.msra.mxu0 0
      %815 = vmatprep.subr.bf16.mxu0 0
      %816 = vmatpush1.bf16.msra.mxu0 0
      %817 = vmatprep.subr.bf16.mxu0 0
      %818 = vmatpush1.bf16.msra.mxu0 0
      %819 = vmatprep.subr.bf16.mxu0 0
      %820 = vmatpush1.bf16.msra.mxu0 0
      %821 = vmatprep.subr.bf16.mxu0 0
      %822 = vmatpush1.bf16.msra.mxu0 0
      %823 = vmatprep.subr.bf16.mxu0 0
      %824 = vmatpush1.bf16.msra.mxu0 0
      %825 = vmatprep.subr.bf16.mxu0 0
      %826 = vmatpush1.bf16.msra.mxu0 0
      %827 = vmatprep.subr.bf16.mxu0 0
      %828 = vmatpush1.bf16.msra.mxu0 0
      %829 = vmatprep.subr.bf16.mxu0 0
      %830 = vmatpush1.bf16.msra.mxu0 0
      %831 = vmatprep.mubr.bf16.mxu0 0
      %832 = vmatmul.mubr.bf16.gmra.mrb[0].mxu0 %v794
      %v833 = vpop.f32.mrb[0].mxu0
      %v834 = vadd.f32 0.0, %v833
      %v835 = vpop.f32.mrb[0].mxu0
      %v836 = vpop.f32.mrb[0].mxu0
      %v837 = vpop.f32.mrb[0].mxu0
      %838 = vdwg.mxu0
      %v839 = vpack.c.bf16 %v834, %v834
      %s840 = scalar_lea.vmem %s4, 4
      %v841 = vld [vmem:[%s840] sm:$0xf]
      %v843 = vsel %vm562, %v839, 0
      %v846 = vsel %vm634, %v841, 0
      %848 = vmatprep.subr.bf16.mxu0 0
      %849 = vmatpush1.bf16.msra.mxu0 %v846
      %850 = vmatprep.subr.bf16.mxu0 0
      %851 = vmatpush1.bf16.msra.mxu0 0
      %852 = vmatprep.subr.bf16.mxu0 0
      %853 = vmatpush1.bf16.msra.mxu0 0
      %854 = vmatprep.subr.bf16.mxu0 0
      %855 = vmatpush1.bf16.msra.mxu0 0
      %856 = vmatprep.subr.bf16.mxu0 0
      %857 = vmatpush1.bf16.msra.mxu0 0
      %858 = vmatprep.subr.bf16.mxu0 0
      %859 = vmatpush1.bf16.msra.mxu0 0
      %860 = vmatprep.subr.bf16.mxu0 0
      %861 = vmatpush1.bf16.msra.mxu0 0
      %862 = vmatprep.subr.bf16.mxu0 0
      %863 = vmatpush1.bf16.msra.mxu0 0
      %864 = vmatprep.subr.bf16.mxu0 0
      %865 = vmatpush1.bf16.msra.mxu0 0
      %866 = vmatprep.subr.bf16.mxu0 0
      %867 = vmatpush1.bf16.msra.mxu0 0
      %868 = vmatprep.subr.bf16.mxu0 0
      %869 = vmatpush1.bf16.msra.mxu0 0
      %870 = vmatprep.subr.bf16.mxu0 0
      %871 = vmatpush1.bf16.msra.mxu0 0
      %872 = vmatprep.subr.bf16.mxu0 0
      %873 = vmatpush1.bf16.msra.mxu0 0
      %874 = vmatprep.subr.bf16.mxu0 0
      %875 = vmatpush1.bf16.msra.mxu0 0
      %876 = vmatprep.subr.bf16.mxu0 0
      %877 = vmatpush1.bf16.msra.mxu0 0
      %878 = vmatprep.subr.bf16.mxu0 0
      %879 = vmatpush1.bf16.msra.mxu0 0
      %880 = vmatprep.mubr.bf16.mxu0 0
      %881 = vmatmul.mubr.bf16.gmra.mrb[0].mxu0 %v843
      %v882 = vpop.f32.mrb[0].mxu0
      %v883 = vadd.f32 0.0, %v882
      %v884 = vpop.f32.mrb[0].mxu0
      %v885 = vpop.f32.mrb[0].mxu0
      %v886 = vpop.f32.mrb[0].mxu0
      %887 = vdwg.mxu0
      %v888 = vadd.f32 %v726, %v883
      %889 = vrot.lane.b32.xlu0 %v547, 112
      %v890 = vpop.permute.xlu0 %889
      %891 = vrot.lane.b32.xlu0 %v547, 80
      %v892 = vpop.permute.xlu0 %891
      %v894 = vsel %vm562, %v890, 0
      %v897 = vsel %vm562, %v892, 0
      %899 = vmatprep.subr.bf16.mxu0 0
      %900 = vmatpush1.bf16.xpose.msra.mxu0 %v897
      %901 = vmatprep.subr.bf16.mxu0 0
      %902 = vmatpush1.bf16.xpose.msra.mxu0 0
      %903 = vmatprep.subr.bf16.mxu0 0
      %904 = vmatpush1.bf16.xpose.msra.mxu0 0
      %905 = vmatprep.subr.bf16.mxu0 0
      %906 = vmatpush1.bf16.xpose.msra.mxu0 0
      %907 = vmatprep.subr.bf16.mxu0 0
      %908 = vmatpush1.bf16.xpose.msra.mxu0 0
      %909 = vmatprep.subr.bf16.mxu0 0
      %910 = vmatpush1.bf16.xpose.msra.mxu0 0
      %911 = vmatprep.subr.bf16.mxu0 0
      %912 = vmatpush1.bf16.xpose.msra.mxu0 0
      %913 = vmatprep.subr.bf16.mxu0 0
      %914 = vmatpush1.bf16.xpose.msra.mxu0 0
      %915 = vmatprep.subr.bf16.mxu0 0
      %916 = vmatpush1.bf16.xpose.msra.mxu0 0
      %917 = vmatprep.subr.bf16.mxu0 0
      %918 = vmatpush1.bf16.xpose.msra.mxu0 0
      %919 = vmatprep.subr.bf16.mxu0 0
      %920 = vmatpush1.bf16.xpose.msra.mxu0 0
      %921 = vmatprep.subr.bf16.mxu0 0
      %922 = vmatpush1.bf16.xpose.msra.mxu0 0
      %923 = vmatprep.subr.bf16.mxu0 0
      %924 = vmatpush1.bf16.xpose.msra.mxu0 0
      %925 = vmatprep.subr.bf16.mxu0 0
      %926 = vmatpush1.bf16.xpose.msra.mxu0 0
      %927 = vmatprep.subr.bf16.mxu0 0
      %928 = vmatpush1.bf16.xpose.msra.mxu0 0
      %929 = vmatprep.subr.bf16.mxu0 0
      %930 = vmatpush1.bf16.xpose.msra.mxu0 0
      %931 = vmatprep.mubr.bf16.mxu0 0
      %932 = vmatmul.mubr.bf16.gmra.mrb[0].mxu0 %v894
      %v933 = vpop.f32.mrb[0].mxu0
      %v934 = vadd.f32 0.0, %v933
      %v935 = vpop.f32.mrb[0].mxu0
      %v936 = vpop.f32.mrb[0].mxu0
      %v937 = vpop.f32.mrb[0].mxu0
      %938 = vdwg.mxu0
      %v939 = vmul.f32 %v934, 0.35355338
      %v940 = vadd.f32 %v939, %v614
      %v941 = vsel %vm562, %v940, -inf
      %942 = vmax.xlane.f32.xlu0 %v941
      %v943 = vpop.xlane.xlu0 %942
      %v944 = vsub.f32 %v940, %v943
      %v945 = vmul.f32 %v944, 1.442695
      %v946 = vpow.pop %v945
      %v947 = vsel %vm562, %v946, 0.0
      %948 = vadd.xlane.f32.xlu0 %v947
      %v949 = vpop.xlane.xlu0 %948
      %v950 = vrcp.pop %v949
      %v951 = vmul.f32 %v946, %v950
      %v952 = vpack.c.bf16 %v951, %v951
      %953 = vrot.lane.b32.xlu0 %v547, 48
      %v954 = vpop.permute.xlu0 %953
      %v956 = vsel %vm562, %v952, 0
      %v959 = vsel %vm634, %v954, 0
      %961 = vmatprep.subr.bf16.mxu0 0
      %962 = vmatpush1.bf16.msra.mxu0 %v959
      %963 = vmatprep.subr.bf16.mxu0 0
      %964 = vmatpush1.bf16.msra.mxu0 0
      %965 = vmatprep.subr.bf16.mxu0 0
      %966 = vmatpush1.bf16.msra.mxu0 0
      %967 = vmatprep.subr.bf16.mxu0 0
      %968 = vmatpush1.bf16.msra.mxu0 0
      %969 = vmatprep.subr.bf16.mxu0 0
      %970 = vmatpush1.bf16.msra.mxu0 0
      %971 = vmatprep.subr.bf16.mxu0 0
      %972 = vmatpush1.bf16.msra.mxu0 0
      %973 = vmatprep.subr.bf16.mxu0 0
      %974 = vmatpush1.bf16.msra.mxu0 0
      %975 = vmatprep.subr.bf16.mxu0 0
      %976 = vmatpush1.bf16.msra.mxu0 0
      %977 = vmatprep.subr.bf16.mxu0 0
      %978 = vmatpush1.bf16.msra.mxu0 0
      %979 = vmatprep.subr.bf16.mxu0 0
      %980 = vmatpush1.bf16.msra.mxu0 0
      %981 = vmatprep.subr.bf16.mxu0 0
      %982 = vmatpush1.bf16.msra.mxu0 0
      %983 = vmatprep.subr.bf16.mxu0 0
      %984 = vmatpush1.bf16.msra.mxu0 0
      %985 = vmatprep.subr.bf16.mxu0 0
      %986 = vmatpush1.bf16.msra.mxu0 0
      %987 = vmatprep.subr.bf16.mxu0 0
      %988 = vmatpush1.bf16.msra.mxu0 0
      %989 = vmatprep.subr.bf16.mxu0 0
      %990 = vmatpush1.bf16.msra.mxu0 0
      %991 = vmatprep.subr.bf16.mxu0 0
      %992 = vmatpush1.bf16.msra.mxu0 0
      %993 = vmatprep.mubr.bf16.mxu0 0
      %994 = vmatmul.mubr.bf16.gmra.mrb[0].mxu0 %v956
      %v995 = vpop.f32.mrb[0].mxu0
      %v996 = vadd.f32 0.0, %v995
      %v997 = vpop.f32.mrb[0].mxu0
      %v998 = vpop.f32.mrb[0].mxu0
      %v999 = vpop.f32.mrb[0].mxu0
      %1000 = vdwg.mxu0
      %v1001 = vpack.c.bf16 %v996, %v996
      %s1002 = scalar_lea.vmem %s4, 8
      %v1003 = vld [vmem:[%s1002] sm:$0xf]
      %v1005 = vsel %vm562, %v1001, 0
      %v1008 = vsel %vm634, %v1003, 0
      %1010 = vmatprep.subr.bf16.mxu0 0
      %1011 = vmatpush1.bf16.msra.mxu0 %v1008
      %1012 = vmatprep.subr.bf16.mxu0 0
      %1013 = vmatpush1.bf16.msra.mxu0 0
      %1014 = vmatprep.subr.bf16.mxu0 0
      %1015 = vmatpush1.bf16.msra.mxu0 0
      %1016 = vmatprep.subr.bf16.mxu0 0
      %1017 = vmatpush1.bf16.msra.mxu0 0
      %1018 = vmatprep.subr.bf16.mxu0 0
      %1019 = vmatpush1.bf16.msra.mxu0 0
      %1020 = vmatprep.subr.bf16.mxu0 0
      %1021 = vmatpush1.bf16.msra.mxu0 0
      %1022 = vmatprep.subr.bf16.mxu0 0
      %1023 = vmatpush1.bf16.msra.mxu0 0
      %1024 = vmatprep.subr.bf16.mxu0 0
      %1025 = vmatpush1.bf16.msra.mxu0 0
      %1026 = vmatprep.subr.bf16.mxu0 0
      %1027 = vmatpush1.bf16.msra.mxu0 0
      %1028 = vmatprep.subr.bf16.mxu0 0
      %1029 = vmatpush1.bf16.msra.mxu0 0
      %1030 = vmatprep.subr.bf16.mxu0 0
      %1031 = vmatpush1.bf16.msra.mxu0 0
      %1032 = vmatprep.subr.bf16.mxu0 0
      %1033 = vmatpush1.bf16.msra.mxu0 0
      %1034 = vmatprep.subr.bf16.mxu0 0
      %1035 = vmatpush1.bf16.msra.mxu0 0
      %1036 = vmatprep.subr.bf16.mxu0 0
      %1037 = vmatpush1.bf16.msra.mxu0 0
      %1038 = vmatprep.subr.bf16.mxu0 0
      %1039 = vmatpush1.bf16.msra.mxu0 0
      %1040 = vmatprep.subr.bf16.mxu0 0
      %1041 = vmatpush1.bf16.msra.mxu0 0
      %1042 = vmatprep.mubr.bf16.mxu0 0
      %1043 = vmatmul.mubr.bf16.gmra.mrb[0].mxu0 %v1005
      %v1044 = vpop.f32.mrb[0].mxu0
      %v1045 = vadd.f32 0.0, %v1044
      %v1046 = vpop.f32.mrb[0].mxu0
      %v1047 = vpop.f32.mrb[0].mxu0
      %v1048 = vpop.f32.mrb[0].mxu0
      %1049 = vdwg.mxu0
      %v1050 = vadd.f32 %v888, %v1045
      %1051 = vrot.lane.b32.xlu0 %v547, 104
      %v1052 = vpop.permute.xlu0 %1051
      %1053 = vrot.lane.b32.xlu0 %v547, 72
      %v1054 = vpop.permute.xlu0 %1053
      %v1056 = vsel %vm562, %v1052, 0
      %v1059 = vsel %vm562, %v1054, 0
      %1061 = vmatprep.subr.bf16.mxu0 0
      %1062 = vmatpush1.bf16.xpose.msra.mxu0 %v1059
      %1063 = vmatprep.subr.bf16.mxu0 0
      %1064 = vmatpush1.bf16.xpose.msra.mxu0 0
      %1065 = vmatprep.subr.bf16.mxu0 0
      %1066 = vmatpush1.bf16.xpose.msra.mxu0 0
      %1067 = vmatprep.subr.bf16.mxu0 0
      %1068 = vmatpush1.bf16.xpose.msra.mxu0 0
      %1069 = vmatprep.subr.bf16.mxu0 0
      %1070 = vmatpush1.bf16.xpose.msra.mxu0 0
      %1071 = vmatprep.subr.bf16.mxu0 0
      %1072 = vmatpush1.bf16.xpose.msra.mxu0 0
      %1073 = vmatprep.subr.bf16.mxu0 0
      %1074 = vmatpush1.bf16.xpose.msra.mxu0 0
      %1075 = vmatprep.subr.bf16.mxu0 0
      %1076 = vmatpush1.bf16.xpose.msra.mxu0 0
      %1077 = vmatprep.subr.bf16.mxu0 0
      %1078 = vmatpush1.bf16.xpose.msra.mxu0 0
      %1079 = vmatprep.subr.bf16.mxu0 0
      %1080 = vmatpush1.bf16.xpose.msra.mxu0 0
      %1081 = vmatprep.subr.bf16.mxu0 0
      %1082 = vmatpush1.bf16.xpose.msra.mxu0 0
      %1083 = vmatprep.subr.bf16.mxu0 0
      %1084 = vmatpush1.bf16.xpose.msra.mxu0 0
      %1085 = vmatprep.subr.bf16.mxu0 0
      %1086 = vmatpush1.bf16.xpose.msra.mxu0 0
      %1087 = vmatprep.subr.bf16.mxu0 0
      %1088 = vmatpush1.bf16.xpose.msra.mxu0 0
      %1089 = vmatprep.subr.bf16.mxu0 0
      %1090 = vmatpush1.bf16.xpose.msra.mxu0 0
      %1091 = vmatprep.subr.bf16.mxu0 0
      %1092 = vmatpush1.bf16.xpose.msra.mxu0 0
      %1093 = vmatprep.mubr.bf16.mxu0 0
      %1094 = vmatmul.mubr.bf16.gmra.mrb[0].mxu0 %v1056
      %v1095 = vpop.f32.mrb[0].mxu0
      %v1096 = vadd.f32 0.0, %v1095
      %v1097 = vpop.f32.mrb[0].mxu0
      %v1098 = vpop.f32.mrb[0].mxu0
      %v1099 = vpop.f32.mrb[0].mxu0
      %1100 = vdwg.mxu0
      %v1101 = vmul.f32 %v1096, 0.35355338
      %v1102 = vadd.f32 %v1101, %v614
      %v1103 = vsel %vm562, %v1102, -inf
      %1104 = vmax.xlane.f32.xlu0 %v1103
      %v1105 = vpop.xlane.xlu0 %1104
      %v1106 = vsub.f32 %v1102, %v1105
      %v1107 = vmul.f32 %v1106, 1.442695
      %v1108 = vpow.pop %v1107
      %v1109 = vsel %vm562, %v1108, 0.0
      %1110 = vadd.xlane.f32.xlu0 %v1109
      %v1111 = vpop.xlane.xlu0 %1110
      %v1112 = vrcp.pop %v1111
      %v1113 = vmul.f32 %v1108, %v1112
      %v1114 = vpack.c.bf16 %v1113, %v1113
      %1115 = vrot.lane.b32.xlu0 %v547, 40
      %v1116 = vpop.permute.xlu0 %1115
      %v1118 = vsel %vm562, %v1114, 0
      %v1121 = vsel %vm634, %v1116, 0
      %1123 = vmatprep.subr.bf16.mxu0 0
      %1124 = vmatpush1.bf16.msra.mxu0 %v1121
      %1125 = vmatprep.subr.bf16.mxu0 0
      %1126 = vmatpush1.bf16.msra.mxu0 0
      %1127 = vmatprep.subr.bf16.mxu0 0
      %1128 = vmatpush1.bf16.msra.mxu0 0
      %1129 = vmatprep.subr.bf16.mxu0 0
      %1130 = vmatpush1.bf16.msra.mxu0 0
      %1131 = vmatprep.subr.bf16.mxu0 0
      %1132 = vmatpush1.bf16.msra.mxu0 0
      %1133 = vmatprep.subr.bf16.mxu0 0
      %1134 = vmatpush1.bf16.msra.mxu0 0
      %1135 = vmatprep.subr.bf16.mxu0 0
      %1136 = vmatpush1.bf16.msra.mxu0 0
      %1137 = vmatprep.subr.bf16.mxu0 0
      %1138 = vmatpush1.bf16.msra.mxu0 0
      %1139 = vmatprep.subr.bf16.mxu0 0
      %1140 = vmatpush1.bf16.msra.mxu0 0
      %1141 = vmatprep.subr.bf16.mxu0 0
      %1142 = vmatpush1.bf16.msra.mxu0 0
      %1143 = vmatprep.subr.bf16.mxu0 0
      %1144 = vmatpush1.bf16.msra.mxu0 0
      %1145 = vmatprep.subr.bf16.mxu0 0
      %1146 = vmatpush1.bf16.msra.mxu0 0
      %1147 = vmatprep.subr.bf16.mxu0 0
      %1148 = vmatpush1.bf16.msra.mxu0 0
      %1149 = vmatprep.subr.bf16.mxu0 0
      %1150 = vmatpush1.bf16.msra.mxu0 0
      %1151 = vmatprep.subr.bf16.mxu0 0
      %1152 = vmatpush1.bf16.msra.mxu0 0
      %1153 = vmatprep.subr.bf16.mxu0 0
      %1154 = vmatpush1.bf16.msra.mxu0 0
      %1155 = vmatprep.mubr.bf16.mxu0 0
      %1156 = vmatmul.mubr.bf16.gmra.mrb[0].mxu0 %v1118
      %v1157 = vpop.f32.mrb[0].mxu0
      %v1158 = vadd.f32 0.0, %v1157
      %v1159 = vpop.f32.mrb[0].mxu0
      %v1160 = vpop.f32.mrb[0].mxu0
      %v1161 = vpop.f32.mrb[0].mxu0
      %1162 = vdwg.mxu0
      %v1163 = vpack.c.bf16 %v1158, %v1158
      %s1164 = scalar_lea.vmem %s4, 12
      %v1165 = vld [vmem:[%s1164] sm:$0xf]
      %v1167 = vsel %vm562, %v1163, 0
      %v1170 = vsel %vm634, %v1165, 0
      %1172 = vmatprep.subr.bf16.mxu0 0
      %1173 = vmatpush1.bf16.msra.mxu0 %v1170
      %1174 = vmatprep.subr.bf16.mxu0 0
      %1175 = vmatpush1.bf16.msra.mxu0 0
      %1176 = vmatprep.subr.bf16.mxu0 0
      %1177 = vmatpush1.bf16.msra.mxu0 0
      %1178 = vmatprep.subr.bf16.mxu0 0
      %1179 = vmatpush1.bf16.msra.mxu0 0
      %1180 = vmatprep.subr.bf16.mxu0 0
      %1181 = vmatpush1.bf16.msra.mxu0 0
      %1182 = vmatprep.subr.bf16.mxu0 0
      %1183 = vmatpush1.bf16.msra.mxu0 0
      %1184 = vmatprep.subr.bf16.mxu0 0
      %1185 = vmatpush1.bf16.msra.mxu0 0
      %1186 = vmatprep.subr.bf16.mxu0 0
      %1187 = vmatpush1.bf16.msra.mxu0 0
      %1188 = vmatprep.subr.bf16.mxu0 0
      %1189 = vmatpush1.bf16.msra.mxu0 0
      %1190 = vmatprep.subr.bf16.mxu0 0
      %1191 = vmatpush1.bf16.msra.mxu0 0
      %1192 = vmatprep.subr.bf16.mxu0 0
      %1193 = vmatpush1.bf16.msra.mxu0 0
      %1194 = vmatprep.subr.bf16.mxu0 0
      %1195 = vmatpush1.bf16.msra.mxu0 0
      %1196 = vmatprep.subr.bf16.mxu0 0
      %1197 = vmatpush1.bf16.msra.mxu0 0
      %1198 = vmatprep.subr.bf16.mxu0 0
      %1199 = vmatpush1.bf16.msra.mxu0 0
      %1200 = vmatprep.subr.bf16.mxu0 0
      %1201 = vmatpush1.bf16.msra.mxu0 0
      %1202 = vmatprep.subr.bf16.mxu0 0
      %1203 = vmatpush1.bf16.msra.mxu0 0
      %1204 = vmatprep.mubr.bf16.mxu0 0
      %1205 = vmatmul.mubr.bf16.gmra.mrb[0].mxu0 %v1167
      %v1206 = vpop.f32.mrb[0].mxu0
      %v1207 = vadd.f32 0.0, %v1206
      %v1208 = vpop.f32.mrb[0].mxu0
      %v1209 = vpop.f32.mrb[0].mxu0
      %v1210 = vpop.f32.mrb[0].mxu0
      %1211 = vdwg.mxu0
      %v1212 = vadd.f32 %v1050, %v1207
      %v1213 = vld [vmem:[%s6] sm:$0x1]
      %v1214 = vld [vmem:[%s7] sm:$0x1]
      %v1215 = vsel %vm503, %v1212, 0.0
      %1216 = vadd.xlane.f32.xlu0 %v1215
      %v1217 = vpop.xlane.xlu0 %1216
      %v1218 = vrcp.pop 32.0
      %v1219 = vmul.f32 %v1217, %v1218
      %v1220 = vsub.f32 %v1212, %v1219
      %v1221 = vmul.f32 %v1220, %v1220
      %v1222 = vsel %vm503, %v1221, 0.0
      %1223 = vadd.xlane.f32.xlu0 %v1222
      %v1224 = vpop.xlane.xlu0 %1223
      %v1225 = vmul.f32 %v1224, %v1218
      %v1226 = vadd.f32 %v1225, 1e-05
      %v1227 = vrsqrt.pop %v1226
      %v1228 = vmul.f32 %v1220, %v1227
      %v1230 = vlaneseq
      %v1231 = vshrl.u32 %v1230, 7
      %v1232 = vsub.s32 0, %v1231
      %v1233 = vrot.slane %v1213, %v1232
      %v1235 = vmul.f32 %v1228, %v1233
      %v1237 = vlaneseq
      %v1238 = vshrl.u32 %v1237, 7
      %v1239 = vsub.s32 0, %v1238
      %v1240 = vrot.slane %v1214, %v1239
      %v1242 = vadd.f32 %v1235, %v1240
      %v1243 = vpack.c.bf16 %v1242, %v1242
      %v1244 = vld [vmem:[%s8] sm:$0xf]
      %v1245 = vld [vmem:[%s8 + $0x4] sm:$0xf]
      %v1246 = vld [vmem:[%s8 + $0x8] sm:$0xf]
      %v1247 = vld [vmem:[%s8 + $0xc] sm:$0xf]
      %v1248 = vld [vmem:[%s9] sm:$0x1]
      %v1250 = vlaneseq
      %v1251 = vshrl.u32 %v1250, 7
      %v1252 = vsub.s32 0, %v1251
      %v1253 = vrot.slane %v1248, %v1252
      %v1259 = vunpack.c.l.b16 %v1244
      %v1260 = vunpack.c.l.b16 %v1245
      %v1261 = vunpack.c.l.b16 %v1246
      %v1262 = vunpack.c.l.b16 %v1247
      %v1263 = vpack.c.b16 %v1260, %v1259
      %v1264 = vpack.c.b16 %v1262, %v1261
      %v1268 = vsel %vm503, %v1243, 0
      %1270 = vmatprep.subr.bf16.mxu0 0
      %1271 = vmatpush1.bf16.msra.mxu0 %v1263
      %1272 = vmatprep.subr.bf16.mxu0 0
      %1273 = vmatpush1.bf16.msra.mxu0 %v1264
      %1274 = vmatprep.subr.bf16.mxu0 0
      %1275 = vmatpush1.bf16.msra.mxu0 0
      %1276 = vmatprep.subr.bf16.mxu0 0
      %1277 = vmatpush1.bf16.msra.mxu0 0
      %1278 = vmatprep.subr.bf16.mxu0 0
      %1279 = vmatpush1.bf16.msra.mxu0 0
      %1280 = vmatprep.subr.bf16.mxu0 0
      %1281 = vmatpush1.bf16.msra.mxu0 0
      %1282 = vmatprep.subr.bf16.mxu0 0
      %1283 = vmatpush1.bf16.msra.mxu0 0
      %1284 = vmatprep.subr.bf16.mxu0 0
      %1285 = vmatpush1.bf16.msra.mxu0 0
      %1286 = vmatprep.subr.bf16.mxu0 0
      %1287 = vmatpush1.bf16.msra.mxu0 0
      %1288 = vmatprep.subr.bf16.mxu0 0
      %1289 = vmatpush1.bf16.msra.mxu0 0
      %1290 = vmatprep.subr.bf16.mxu0 0
      %1291 = vmatpush1.bf16.msra.mxu0 0
      %1292 = vmatprep.subr.bf16.mxu0 0
      %1293 = vmatpush1.bf16.msra.mxu0 0
      %1294 = vmatprep.subr.bf16.mxu0 0
      %1295 = vmatpush1.bf16.msra.mxu0 0
      %1296 = vmatprep.subr.bf16.mxu0 0
      %1297 = vmatpush1.bf16.msra.mxu0 0
      %1298 = vmatprep.subr.bf16.mxu0 0
      %1299 = vmatpush1.bf16.msra.mxu0 0
      %1300 = vmatprep.subr.bf16.mxu0 0
      %1301 = vmatpush1.bf16.msra.mxu0 0
      %1302 = vmatprep.mubr.bf16.mxu0 0
      %1303 = vmatmul.mubr.bf16.gmra.mrb[0].mxu0 %v1268
      %v1304 = vpop.f32.mrb[0].mxu0
      %v1305 = vadd.f32 %v1253, %v1304
      %v1306 = vpop.f32.mrb[0].mxu0
      %v1307 = vpop.f32.mrb[0].mxu0
      %v1308 = vpop.f32.mrb[0].mxu0
      %1309 = vdwg.mxu0
      %v1310 = vmul.f32 %v1305, 0.5
      %v1311 = vmul.f32 %v1305, 0.044715
      %v1312 = vmul.f32 %v1311, %v1305
      %v1313 = vmul.f32 %v1312, %v1305
      %v1314 = vadd.f32 %v1305, %v1313
      %v1315 = vmul.f32 %v1314, 0.7978846
      %v1316 = vtanh.pop %v1315
      %v1317 = vadd.f32 %v1316, 1.0
      %v1318 = vmul.f32 %v1310, %v1317
      %v1319 = vpack.c.bf16 %v1318, %v1318
      %v1320 = vld [vmem:[%s10] sm:$0xf]
      %v1321 = vld [vmem:[%s10 + $0x4] sm:$0xf]
      %v1322 = vld [vmem:[%s10 + $0x8] sm:$0xf]
      %v1323 = vld [vmem:[%s10 + $0xc] sm:$0xf]
      %v1324 = vld [vmem:[%s10 + $0x10] sm:$0xf]
      %v1325 = vld [vmem:[%s10 + $0x14] sm:$0xf]
      %v1326 = vld [vmem:[%s10 + $0x18] sm:$0xf]
      %v1327 = vld [vmem:[%s10 + $0x1c] sm:$0xf]
      %v1328 = vld [vmem:[%s11] sm:$0x1]
      %v1330 = vlaneseq
      %v1331 = vshrl.u32 %v1330, 7
      %v1332 = vsub.s32 0, %v1331
      %v1333 = vrot.slane %v1328, %v1332
      %v1343 = vunpack.c.l.b16 %v1320
      %v1344 = vunpack.c.l.b16 %v1321
      %v1345 = vunpack.c.l.b16 %v1322
      %v1346 = vunpack.c.l.b16 %v1323
      %v1347 = vunpack.c.l.b16 %v1324
      %v1348 = vunpack.c.l.b16 %v1325
      %v1349 = vunpack.c.l.b16 %v1326
      %v1350 = vunpack.c.l.b16 %v1327
      %v1351 = vpack.c.b16 %v1344, %v1343
      %v1352 = vpack.c.b16 %v1346, %v1345
      %v1353 = vpack.c.b16 %v1348, %v1347
      %v1354 = vpack.c.b16 %v1350, %v1349
      %vm1359 = vcmask 523264
      %v1361 = vsel %vm1359, %v1319, 0
      %1363 = vmatprep.subr.bf16.mxu0 0
      %1364 = vmatpush1.bf16.msra.mxu0 %v1351
      %1365 = vmatprep.subr.bf16.mxu0 0
      %1366 = vmatpush1.bf16.msra.mxu0 %v1352
      %1367 = vmatprep.subr.bf16.mxu0 0
      %1368 = vmatpush1.bf16.msra.mxu0 %v1353
      %1369 = vmatprep.subr.bf16.mxu0 0
      %1370 = vmatpush1.bf16.msra.mxu0 %v1354
      %1371 = vmatprep.subr.bf16.mxu0 0
      %1372 = vmatpush1.bf16.msra.mxu0 0
      %1373 = vmatprep.subr.bf16.mxu0 0
      %1374 = vmatpush1.bf16.msra.mxu0 0
      %1375 = vmatprep.subr.bf16.mxu0 0
      %1376 = vmatpush1.bf16.msra.mxu0 0
      %1377 = vmatprep.subr.bf16.mxu0 0
      %1378 = vmatpush1.bf16.msra.mxu0 0
      %1379 = vmatprep.subr.bf16.mxu0 0
      %1380 = vmatpush1.bf16.msra.mxu0 0
      %1381 = vmatprep.subr.bf16.mxu0 0
      %1382 = vmatpush1.bf16.msra.mxu0 0
      %1383 = vmatprep.subr.bf16.mxu0 0
      %1384 = vmatpush1.bf16.msra.mxu0 0
      %1385 = vmatprep.subr.bf16.mxu0 0
      %1386 = vmatpush1.bf16.msra.mxu0 0
      %1387 = vmatprep.subr.bf16.mxu0 0
      %1388 = vmatpush1.bf16.msra.mxu0 0
      %1389 = vmatprep.subr.bf16.mxu0 0
      %1390 = vmatpush1.bf16.msra.mxu0 0
      %1391 = vmatprep.subr.bf16.mxu0 0
      %1392 = vmatpush1.bf16.msra.mxu0 0
      %1393 = vmatprep.subr.bf16.mxu0 0
      %1394 = vmatpush1.bf16.msra.mxu0 0
      %1395 = vmatprep.mubr.bf16.mxu0 0
      %1396 = vmatmul.mubr.bf16.gmra.mrb[0].mxu0 %v1361
      %v1397 = vpop.f32.mrb[0].mxu0
      %v1398 = vadd.f32 %v1333, %v1397
      %v1399 = vpop.f32.mrb[0].mxu0
      %v1400 = vpop.f32.mrb[0].mxu0
      %v1401 = vpop.f32.mrb[0].mxu0
      %1402 = vdwg.mxu0
      %v1403 = vadd.f32 %v1398, %v1242
      %v1404 = vld [vmem:[%s12] sm:$0x1]
      %v1405 = vld [vmem:[%s13] sm:$0x1]
      %v1406 = vsel %vm503, %v1403, 0.0
      %1407 = vadd.xlane.f32.xlu0 %v1406
      %v1408 = vpop.xlane.xlu0 %1407
      %v1409 = vmul.f32 %v1408, %v1218
      %v1410 = vsub.f32 %v1403, %v1409
      %v1411 = vmul.f32 %v1410, %v1410
      %v1412 = vsel %vm503, %v1411, 0.0
      %1413 = vadd.xlane.f32.xlu0 %v1412
      %v1414 = vpop.xlane.xlu0 %1413
      %v1415 = vmul.f32 %v1414, %v1218
      %v1416 = vadd.f32 %v1415, 1e-05
      %v1417 = vrsqrt.pop %v1416
      %v1418 = vmul.f32 %v1410, %v1417
      %v1420 = vlaneseq
      %v1421 = vshrl.u32 %v1420, 7
      %v1422 = vsub.s32 0, %v1421
      %v1423 = vrot.slane %v1404, %v1422
      %v1425 = vmul.f32 %v1418, %v1423
      %v1427 = vlaneseq
      %v1428 = vshrl.u32 %v1427, 7
      %v1429 = vsub.s32 0, %v1428
      %v1430 = vrot.slane %v1405, %v1429
      %v1432 = vadd.f32 %v1425, %v1430
      %1433 = vst.msk [vmem:[%s476] sm:$0xff] %vm503, %v1432
      %p1434 = scmp.lt.s32.totalorder %s25, 1
      %s1435 = scalar_select %p1434, %s25, 1
      %s1436 = smul.addr %s1435, 8
      %s1437 = scalar_lea.vmem %s14, %s1436
      // Predicated region
      $region77: #{roberta_for_sequence_classification.5} parent=75 // pred_check
        %p1438 = pneg %p347
      $region78: #{roberta_for_sequence_classification.5} parent=75 // pred_check_branch
        %1440 = sbr.rel (%p1438) target = $region80
      $region79: #{roberta_for_sequence_classification.5} parent=75 // pred_region
        _
      $region80: #{roberta_for_sequence_classification.5} parent=75 // pred_fallthru
        _
    $region76: #{roberta_for_sequence_classification.5} parent=5 // pred_fallthru
      _
    %p1441 = scmp.le.s32.totalorder 2, %s20
    // Predicated region
    $region81: #{roberta_for_sequence_classification.5} parent=5 // pred_check
      %p1442 = pneg %p1441
    $region82: #{roberta_for_sequence_classification.5} parent=5 // pred_check_branch
      %1444 = sbr.rel (%p1442) target = $region84
    $region83: #{roberta_for_sequence_classification.5} parent=5 // pred_region
      %s1445 = ssub.s32 %s20, 2
      // Predicated region
      $region85: #{roberta_for_sequence_classification.5} parent=83 // pred_check
        %p1446 = pneg %p353
      $region86: #{roberta_for_sequence_classification.5} parent=83 // pred_check_branch
        %1448 = sbr.rel (%p1446) target = $region88
      $region87: #{roberta_for_sequence_classification.5} parent=83 // pred_region
        %p1449 = scmp.lt.s32.totalorder %s26, 1
        %s1450 = scalar_select %p1449, %s26, 1
        %s1451 = smul.addr %s1450, 8
        %s1452 = scalar_lea.vmem %s14, %s1451
      $region88: #{roberta_for_sequence_classification.5} parent=83 // pred_fallthru
        _
    $region84: #{roberta_for_sequence_classification.5} parent=5 // pred_fallthru
      _
  $region6: #{roberta_for_sequence_classification.5} parent=0 // loop_footer
    %s24 = sadd.s32 1, %s20
  $region7: #{roberta_for_sequence_classification.5} parent=0 // loop_footer_branch
    %19 = sbr.rel target = $region3
  $region8: #{roberta_for_sequence_classification.5} parent=0 // loop_exit
    _

</llo_original>
